<compile_context>
chip_gen: v5e
topology: v5e:2x2
jax: 0.10.0
libtpu: 0.0.40
codegen_flags: <defaults>
</compile_context>

<pallas_src>
import functools

import jax
import jax.numpy as jnp
from jax.experimental import pallas as pl
from jax.experimental.pallas import tpu as pltpu

# --------------------- config (eval-mode Baseline, resnet18 sizes) -----------
N = 16         # batch (tiled over the grid)
C = 512        # in_planes for model_name='resnet18'
H = W = 8      # spatial size of backbone output
HW = H * W
NECK = 128     # neck_planes > 0  -> fcneck + fcneck_bn are active
BN_EPS = 1e-5
TILE_N = 8     # batch tile per grid step (multiple of 8; bump to 128 for real
               # inference batches so the MXU rows fill)


# ------------------------------ Pallas kernel --------------------------------
def head_kernel(x_ref, w_ref, b_ref, o_ref):
    # x_ref: (TILE_N, HW, C)  backbone feature map tile (channels on lanes)
    # w_ref: (C, NECK)        fcneck weight, transposed and BN-scale folded in
    # b_ref: (1, NECK)        folded BN bias (beta - mean * scale)
    # o_ref: (TILE_N, NECK)   output global_feat tile
    x = x_ref[...].astype(jnp.float32)
    hw = x.shape[1]

    # AdaptiveAvgPool2d(1) + AdaptiveMaxPool2d(1): reduce the flat spatial axis.
    avg = jnp.sum(x, axis=1) * (1.0 / hw)           # (TILE_N, C)
    mx = jnp.max(x, axis=1)                         # (TILE_N, C)
    pooled = avg + mx                               # (TILE_N, C)

    # fcneck (bias-free Linear) with BatchNorm1d (eval) folded into W' and b'.
    y = jnp.dot(pooled, w_ref[...], preferred_element_type=jnp.float32)
    # dropout_rate > 0 is a no-op in eval mode (self.training == False).
    o_ref[...] = (y + b_ref[...]).astype(o_ref.dtype)


# ------------------------------ wrappers --------------------------------------
def fold_fcneck_bn(w_fcneck, bn_gamma, bn_beta, bn_mean, bn_var, eps=BN_EPS):
    """One-time (offline) fold of eval-mode BatchNorm1d into the neck weight/bias.

    Returns W' of shape (C, NECK) and b' of shape (1, NECK) such that
      fcneck_bn(fcneck(p)) == p @ W' + b'
    """
    scale = bn_gamma * jax.lax.rsqrt(bn_var + eps)          # (NECK,)
    w_folded = (w_fcneck * scale[:, None]).T                # (C, NECK)
    bias = (bn_beta - bn_mean * scale).reshape(1, -1)       # (1, NECK)
    return w_folded, bias


def baseline_head(feat_nhwc, w_folded, bias, *, tile_n=TILE_N):
    """feat_nhwc: (N, H*W, C) float32 backbone feature map (channels last).

    The backbone should emit this layout directly (natural on TPU); no per-call
    transpose is performed here.
    """
    n, hw, c = feat_nhwc.shape
    neck = w_folded.shape[1]

    # Batch tiling: TILE_N rows per grid step.  Fall back to a single full-batch
    # block when the batch does not tile evenly (full-dim block is always legal).
    if n % tile_n != 0:
        tile_n = n
    grid = (n // tile_n,)

    return pl.pallas_call(
        head_kernel,
        out_shape=jax.ShapeDtypeStruct((n, neck), jnp.float32),
        grid_spec=pltpu.PrefetchScalarGridSpec(
            num_scalar_prefetch=0,
            grid=grid,
            in_specs=[
                pl.BlockSpec((tile_n, hw, c), lambda i: (i, 0, 0)),
                pl.BlockSpec((c, neck), lambda i: (0, 0)),
                pl.BlockSpec((1, neck), lambda i: (0, 0)),
            ],
            out_specs=pl.BlockSpec((tile_n, neck), lambda i: (i, 0)),
        ),
        compiler_params=pltpu.CompilerParams(
            # Batch tiles are independent -> v7x can shard them across its two
            # TensorCores; no-op on v5e/v6e.
            dimension_semantics=("parallel",)),
    )(feat_nhwc, w_folded, bias)


# ------------------------------ reference (plain JAX) -------------------------
def baseline_head_ref(feat_nhwc, w_fcneck, bn_gamma, bn_beta, bn_mean, bn_var):
    pooled = jnp.mean(feat_nhwc, axis=1) + jnp.max(feat_nhwc, axis=1)   # (N, C)
    y = pooled @ w_fcneck.T                                             # (N, NECK)
    scale = bn_gamma / jnp.sqrt(bn_var + BN_EPS)
    return (y - bn_mean) * scale + bn_beta


if __name__ == "__main__":
    key = jax.random.PRNGKey(0)
    k_x, k_w, k_g, k_b, k_m, k_v = jax.random.split(key, 6)

    # Backbone output feature map (stand-in for self.base(x)), already in the
    # TPU-friendly (N, H*W, C) layout -- no NCHW transpose in the hot path.
    feat = jax.random.normal(k_x, (N, HW, C), dtype=jnp.float32)

    # fcneck: Linear(C, NECK, bias=False) with xavier_uniform init.
    xavier_bound = (6.0 / (C + NECK)) ** 0.5
    w_fcneck = jax.random.uniform(
        k_w, (NECK, C), minval=-xavier_bound, maxval=xavier_bound,
        dtype=jnp.float32)

    # fcneck_bn: BatchNorm1d(NECK), eval mode.  (Kaiming init would be
    # gamma=1, beta=0, mean=0, var=1; use non-trivial values here so the
    # BN-into-weight fold is actually exercised.)
    bn_gamma = 1.0 + 0.1 * jax.random.normal(k_g, (NECK,), jnp.float32)
    bn_beta = 0.1 * jax.random.normal(k_b, (NECK,), jnp.float32)
    bn_mean = 0.1 * jax.random.normal(k_m, (NECK,), jnp.float32)
    bn_var = jax.random.uniform(k_v, (NECK,), minval=0.5, maxval=1.5,
                                dtype=jnp.float32)

    # One-time fold (eval-mode constants) -> 3 kernel operands instead of 6.
    w_folded, bias = fold_fcneck_bn(w_fcneck, bn_gamma, bn_beta, bn_mean, bn_var)

    run = jax.jit(functools.partial(baseline_head, tile_n=TILE_N))
    out = jax.block_until_ready(run(feat, w_folded, bias))

    ref = baseline_head_ref(feat, w_fcneck, bn_gamma, bn_beta, bn_mean, bn_var)
    assert out.shape == (N, NECK)
    assert jnp.allclose(out, ref, atol=1e-4, rtol=1e-4), "mismatch vs JAX reference"

    print("KERNEL_OK")
</pallas_src>

<mosaic_0001>
module attributes {stable_mosaic.version = 11 : i64} {
  func.func @head_kernel(%arg0: i32, %arg1: memref<8x64x512xf32, #tpu.memory_space<vmem>>, %arg2: memref<512x128xf32, #tpu.memory_space<vmem>>, %arg3: memref<1x128xf32, #tpu.memory_space<vmem>>, %arg4: memref<8x128xf32, #tpu.memory_space<vmem>>) attributes {dimension_semantics = [#tpu.dimension_semantics<parallel>], iteration_bounds = array<i64: 2>, scalar_prefetch = 0 : i64, scratch_operands = 0 : i64, tpu.core_type = #tpu.core_type<tc>, window_params = [{transform_indices = @transform_0, window_bounds = array<i64: 8, 64, 512>}, {pipeline_mode = #tpu.pipeline_mode<synchronous>, transform_indices = @transform_1, window_bounds = array<i64: 512, 128>}, {pipeline_mode = #tpu.pipeline_mode<synchronous>, transform_indices = @transform_2, window_bounds = array<i64: 1, 128>}, {transform_indices = @transform_3, window_bounds = array<i64: 8, 128>}]} {
    %c0 = arith.constant 0 : index
    %c0_0 = arith.constant 0 : index
    %c0_1 = arith.constant 0 : index
    %0 = vector.load %arg1[%c0, %c0_0, %c0_1] : memref<8x64x512xf32, #tpu.memory_space<vmem>>, vector<8x64x512xf32>
    %cst = arith.constant dense<0.000000e+00> : vector<8x512xf32>
    %1 = vector.multi_reduction <add>, %0, %cst [1] : vector<8x64x512xf32> to vector<8x512xf32>
    %cst_2 = arith.constant 1.562500e-02 : f32
    %2 = vector.broadcast %cst_2 : f32 to vector<8x512xf32>
    %3 = arith.mulf %1, %2 : vector<8x512xf32>
    %cst_3 = arith.constant dense<0xFF800000> : vector<8x512xf32>
    %4 = vector.multi_reduction <maximumf>, %0, %cst_3 [1] : vector<8x64x512xf32> to vector<8x512xf32>
    %5 = arith.addf %3, %4 : vector<8x512xf32>
    %c0_4 = arith.constant 0 : index
    %c0_5 = arith.constant 0 : index
    %6 = vector.load %arg2[%c0_4, %c0_5] : memref<512x128xf32, #tpu.memory_space<vmem>>, vector<512x128xf32>
    %cst_6 = arith.constant dense<0.000000e+00> : vector<8x128xf32>
    %7 = tpu.matmul %5, %6, %cst_6 {dimension_numbers = #tpu.dot_dimension_numbers<[1], [0], [0], [1], [0, 0, 1, 1], [], []>} : vector<8x512xf32>, vector<512x128xf32>, vector<8x128xf32> -> vector<8x128xf32>
    %c0_7 = arith.constant 0 : index
    %c0_8 = arith.constant 0 : index
    %8 = vector.load %arg3[%c0_7, %c0_8] : memref<1x128xf32, #tpu.memory_space<vmem>>, vector<1x128xf32>
    %9 = vector.broadcast %8 : vector<1x128xf32> to vector<8x128xf32>
    %10 = arith.addf %7, %9 : vector<8x128xf32>
    %c0_9 = arith.constant 0 : index
    %c0_10 = arith.constant 0 : index
    %11 = vector.load %arg4[%c0_9, %c0_10] : memref<8x128xf32, #tpu.memory_space<vmem>>, vector<8x128xf32>
    tpu.vector_store %arg4[%c0_9, %c0_10], %10 {strides = array<i32>} : memref<8x128xf32, #tpu.memory_space<vmem>>, vector<8x128xf32>,
    return
  }
  func.func @transform_0(%arg0: i32) -> (i32, i32, i32) {
    %c0_i32 = arith.constant 0 : i32
    %c0_i32_0 = arith.constant 0 : i32
    %c0_i32_1 = arith.constant 0 : i32
    return %arg0, %c0_i32, %c0_i32_0 : i32, i32, i32
  }
  func.func @transform_1(%arg0: i32) -> (i32, i32) {
    %c0_i32 = arith.constant 0 : i32
    %c0_i32_0 = arith.constant 0 : i32
    %c0_i32_1 = arith.constant 0 : i32
    return %c0_i32, %c0_i32_0 : i32, i32
  }
  func.func @transform_2(%arg0: i32) -> (i32, i32) {
    %c0_i32 = arith.constant 0 : i32
    %c0_i32_0 = arith.constant 0 : i32
    %c0_i32_1 = arith.constant 0 : i32
    return %c0_i32, %c0_i32_0 : i32, i32
  }
  func.func @transform_3(%arg0: i32) -> (i32, i32) {
    %c0_i32 = arith.constant 0 : i32
    %c0_i32_0 = arith.constant 0 : i32
    return %arg0, %c0_i32 : i32, i32
  }
}

</mosaic_0001>

<llo_original>
// kernel: baseline_head.1
$region0: #{baseline_head.1}
  #allocation0 [shape = 'u32[]', space=smem, size = 0x4, offset = 0x4, fixed_abs, tag = 'smem constant byte address 0x4 - core index']
  #allocation1 [shape = 'u32[72,128]{1,0:T(1,128)}', space=vmem, size = 0x9000, scoped, tag = 'internal scratch']
  %s0 = inlined_call_operand.hbm [shape: f32[16,64,512], index: 0, kind: input, shape index: {}]
  %s1 = inlined_call_operand.hbm [shape: f32[512,128], index: 1, kind: input, shape index: {}]
  %s2 = inlined_call_operand.hbm [shape: f32[1,128], index: 2, kind: input, shape index: {}]
  %s3 = inlined_call_operand.hbm [shape: f32[16,128], index: 3, kind: output, shape index: {}]
  %s4 = sld [smem:[#allocation0]]
  $region57: #{baseline_head.1} parent=0
    _
  %s6 = ssub.s32 1, %s4
  %s7 = scalar_select 0, %s6, %s4
  $region1: #{baseline_head.1} parent=0
    #allocation2 [shape = 'u8[2097152]{0}', space=vmem, size = 0x200000, scoped, tag = 'input window, operand 0']
    #allocation3 [shape = 's32[2]{0}', space=sflag, size = 0x8, scoped, tag = 'scoped memory for baseline_head.1']
    #allocation4 [shape = 's32[2]{0}', space=sflag, size = 0x8, scoped, tag = 'scoped memory for baseline_head.1']
    #allocation5 [shape = 'u8[262144]{0}', space=vmem, size = 0x40000, scoped, tag = 'input window, operand 1, single buffered']
    #allocation6 [shape = 's32[1]{0}', space=sflag, size = 0x4, scoped, tag = 'scoped memory for baseline_head.1']
    #allocation7 [shape = 'u8[512]{0}', space=vmem, size = 0x400, scoped, tag = 'input window, operand 2, single buffered']
    #allocation8 [shape = 'u8[8192]{0}', space=vmem, size = 0x2000, scoped, tag = 'output window, operand 0']
    %8 = vsyncpa [#allocation3], 0
    %s9 = scalar_lea.sflag [#allocation3], 1
    %10 = vsyncpa %s9, 0
    %11 = vsyncpa [#allocation6], 0
    %12 = vsyncpa [#allocation4], 0
    %s13 = scalar_lea.sflag [#allocation4], 1
    %14 = vsyncpa %s13, 0
    loop: start=0, step=1, limit=4
    $region2: #{baseline_head.1} parent=1 // loop_pre_header
      _
    $region3: #{baseline_head.1} parent=1 // loop_header
      %s16 = sphi 0, %s20
      %p17 = scmp.ge.s32.totalorder %s16, 4
      %s26 = sphi 0, %s28
      %s29 = sphi 0, %s26
      %s30 = sphi 0, %s29
      %s46 = sphi 0, %s30
      %s50 = sphi 0, %s50
      %s52 = sphi 0, %s50
      %s53 = sphi 0, %s52
      %s67 = sphi 0, %s53
      %s71 = sphi 0, %s71
      %s73 = sphi 0, %s71
      %s74 = sphi 0, %s73
      %s88 = sphi 0, %s74
      %s94 = sphi 0, %s96
      %s97 = sphi 0, %s94
      %s98 = sphi 0, %s97
      %s114 = sphi 0, %s98
    $region4: #{baseline_head.1} parent=1 // loop_header_branch
      %19 = sbr.rel (%p17) target = $region8
    $region5: #{baseline_head.1} parent=1 // loop_body
      %s21 = ssub.s32 %s16, 1
      %s22 = ssub.s32 %s16, 2
      %s23 = sadd.s32 %s16, 1
      %s24 = ssub.s32 %s16, %s23
      %p25 = scmp.eq.s32.totalorder %s24, 0
      %s27 = sadd.s32 %s26, 1
      %s28 = scalar_select %p25, %s26, %s27
      %p31 = pneg %p25
      %p32 = scmp.eq.s32.totalorder %s16, 1
      %p33 = por %p31, %p32
      %p34 = scmp.ne.s32.totalorder %s26, %s29
      %p35 = scmp.eq.s32.totalorder %s16, 0
      %p36 = por %p34, %p35
      %p37 = scmp.ne.s32.totalorder %s26, %s29
      %p38 = scmp.eq.s32.totalorder %s21, 1
      %p39 = por %p37, %p38
      %p40 = scmp.ne.s32.totalorder %s29, %s30
      %p41 = scmp.eq.s32.totalorder %s21, 0
      %p42 = por %p40, %p41
      %p43 = scmp.ne.s32.totalorder %s29, %s30
      %p44 = scmp.eq.s32.totalorder %s22, 1
      %p45 = por %p43, %p44
      %p47 = scmp.ne.s32.totalorder %s30, %s46
      %p48 = scmp.eq.s32.totalorder %s22, 0
      %p49 = por %p47, %p48
      %s51 = sadd.s32 %s50, 1
      %p54 = scmp.eq.s32.totalorder %s16, 1
      %p55 = scmp.ne.s32.totalorder %s50, %s52
      %p56 = scmp.eq.s32.totalorder %s16, 0
      %p57 = por %p55, %p56
      %p58 = scmp.ne.s32.totalorder %s50, %s52
      %p59 = scmp.eq.s32.totalorder %s21, 1
      %p60 = por %p58, %p59
      %p61 = scmp.ne.s32.totalorder %s52, %s53
      %p62 = scmp.eq.s32.totalorder %s21, 0
      %p63 = por %p61, %p62
      %p64 = scmp.ne.s32.totalorder %s52, %s53
      %p65 = scmp.eq.s32.totalorder %s22, 1
      %p66 = por %p64, %p65
      %p68 = scmp.ne.s32.totalorder %s53, %s67
      %p69 = scmp.eq.s32.totalorder %s22, 0
      %p70 = por %p68, %p69
      %s72 = sadd.s32 %s71, 1
      %p75 = scmp.eq.s32.totalorder %s16, 1
      %p76 = scmp.ne.s32.totalorder %s71, %s73
      %p77 = scmp.eq.s32.totalorder %s16, 0
      %p78 = por %p76, %p77
      %p79 = scmp.ne.s32.totalorder %s71, %s73
      %p80 = scmp.eq.s32.totalorder %s21, 1
      %p81 = por %p79, %p80
      %p82 = scmp.ne.s32.totalorder %s73, %s74
      %p83 = scmp.eq.s32.totalorder %s21, 0
      %p84 = por %p82, %p83
      %p85 = scmp.ne.s32.totalorder %s73, %s74
      %p86 = scmp.eq.s32.totalorder %s22, 1
      %p87 = por %p85, %p86
      %p89 = scmp.ne.s32.totalorder %s74, %s88
      %p90 = scmp.eq.s32.totalorder %s22, 0
      %p91 = por %p89, %p90
      %s92 = ssub.s32 %s16, %s23
      %p93 = scmp.eq.s32.totalorder %s92, 0
      %s95 = sadd.s32 %s94, 1
      %s96 = scalar_select %p93, %s94, %s95
      %p99 = pneg %p93
      %p100 = scmp.eq.s32.totalorder %s16, 1
      %p101 = por %p99, %p100
      %p102 = scmp.ne.s32.totalorder %s94, %s97
      %p103 = scmp.eq.s32.totalorder %s16, 0
      %p104 = por %p102, %p103
      %p105 = scmp.ne.s32.totalorder %s94, %s97
      %p106 = scmp.eq.s32.totalorder %s21, 1
      %p107 = por %p105, %p106
      %p108 = scmp.ne.s32.totalorder %s97, %s98
      %p109 = scmp.eq.s32.totalorder %s21, 0
      %p110 = por %p108, %p109
      %p111 = scmp.ne.s32.totalorder %s97, %s98
      %p112 = scmp.eq.s32.totalorder %s22, 1
      %p113 = por %p111, %p112
      %p115 = scmp.ne.s32.totalorder %s98, %s114
      %p116 = scmp.eq.s32.totalorder %s22, 0
      %p117 = por %p115, %p116
      %p118 = scmp.le.s32.totalorder 1, %s16
      %p119 = scmp.lt.s32.totalorder %s16, 3
      %p120 = pnand %p118, %p119
      %p121 = pneg %p120
      // Predicated region
      $region9: #{baseline_head.1} parent=5 // pred_check
        _
      $region10: #{baseline_head.1} parent=5 // pred_check_branch
        %123 = sbr.rel (%p120) target = $region12
      $region11: #{baseline_head.1} parent=5 // pred_region
        %s124 = ssub.s32 %s16, 1
        // Predicated region
        $region13: #{baseline_head.1} parent=11 // pred_check
          %p125 = pneg %p63
        $region14: #{baseline_head.1} parent=11 // pred_check_branch
          %127 = sbr.rel (%p125) target = $region16
        $region15: #{baseline_head.1} parent=11 // pred_region
          %129 = vsyncadd [#allocation6], 0
          %s130 = sshll.u32 %s1, 4
          %s131 = int_to_ptr.hbm [resolvable:$true] %s130
          %s132 = sshll.u32 [#allocation5], 4
          %s133 = int_to_ptr.vmem [resolvable:$true] %s132
          %138 = dma.hbm_to_vmem [thread:$0]  %s131, 8192, %s133, [#allocation6], 128, 128, 8
        $region16: #{baseline_head.1} parent=11 // pred_fallthru
          _
        // Predicated region
        $region17: #{baseline_head.1} parent=11 // pred_check
          %p139 = pneg %p84
        $region18: #{baseline_head.1} parent=11 // pred_check_branch
          %141 = sbr.rel (%p139) target = $region20
        $region19: #{baseline_head.1} parent=11 // pred_region
          %143 = vsyncadd [#allocation6], 0
          %s145 = sshll.u32 %s2, 4
          %s146 = int_to_ptr.hbm [resolvable:$true] %s145
          %s147 = sshll.u32 [#allocation7], 4
          %s148 = int_to_ptr.vmem [resolvable:$true] %s147
          %150 = dma.hbm_to_vmem [thread:$0]  %s146, 16, %s148, [#allocation6]
        $region20: #{baseline_head.1} parent=11 // pred_fallthru
          _
      $region12: #{baseline_head.1} parent=5 // pred_fallthru
        _
      %p151 = scmp.lt.s32.totalorder %s16, 2
      // Predicated region
      $region21: #{baseline_head.1} parent=5 // pred_check
        %p152 = pneg %p151
      $region22: #{baseline_head.1} parent=5 // pred_check_branch
        %154 = sbr.rel (%p152) target = $region24
      $region23: #{baseline_head.1} parent=5 // pred_region
        // Predicated region
        $region25: #{baseline_head.1} parent=23 // pred_check
          %p155 = pneg %p36
        $region26: #{baseline_head.1} parent=23 // pred_check_branch
          %157 = sbr.rel (%p155) target = $region28
        $region27: #{baseline_head.1} parent=23 // pred_region
          %s158 = sand.u32 %s26, 1
          %s159 = scalar_lea.sflag [#allocation3], %s158
          %s160 = sand.u32 %s26, 1
          %s161 = smul.addr %s160, 2048
          %s162 = scalar_lea.vmem [#allocation2], %s161
          %s163 = smul.u32 8, %s16
          %165 = vsyncadd %s159, 0
          %s166 = smul.addr %s163, 32
          %s167 = smul.addr %s166, 8
          %s168 = scalar_lea.hbm %s0, %s167
          %s169 = sshll.u32 %s168, 4
          %s170 = int_to_ptr.hbm [resolvable:$true] %s169
          %s171 = sshll.u32 %s162, 4
          %s172 = int_to_ptr.vmem [resolvable:$true] %s171
          %177 = dma.hbm_to_vmem [thread:$0]  %s170, 32768, %s172, %s159, 512, 512, 32
        $region28: #{baseline_head.1} parent=23 // pred_fallthru
          _
      $region24: #{baseline_head.1} parent=5 // pred_fallthru
        _
      %p178 = scmp.le.s32.totalorder 1, %s16
      %p179 = scmp.lt.s32.totalorder %s16, 3
      %p180 = pnand %p178, %p179
      %p181 = pneg %p180
      // Predicated region
      $region29: #{baseline_head.1} parent=5 // pred_check
        _
      $region30: #{baseline_head.1} parent=5 // pred_check_branch
        %183 = sbr.rel (%p180) target = $region32
      $region31: #{baseline_head.1} parent=5 // pred_region
        %s184 = ssub.s32 %s16, 1
        %s185 = sand.u32 %s29, 1
        %s186 = scalar_lea.sflag [#allocation3], %s185
        %s187 = sand.u32 %s29, 1
        %s188 = smul.addr %s187, 2048
        %s189 = scalar_lea.vmem [#allocation2], %s188
        // Predicated region
        $region33: #{baseline_head.1} parent=31 // pred_check
          %p190 = pneg %p42
        $region34: #{baseline_head.1} parent=31 // pred_check_branch
          %192 = sbr.rel (%p190) target = $region36
        $region35: #{baseline_head.1} parent=31 // pred_region
          %194 = dma.done %s186, 32768
        $region36: #{baseline_head.1} parent=31 // pred_fallthru
          _
        // Predicated region
        $region37: #{baseline_head.1} parent=31 // pred_check
          %p195 = pneg %p63
        $region38: #{baseline_head.1} parent=31 // pred_check_branch
          %197 = sbr.rel (%p195) target = $region40
        $region39: #{baseline_head.1} parent=31 // pred_region
          %199 = dma.done [#allocation6], 8192
        $region40: #{baseline_head.1} parent=31 // pred_fallthru
          _
        // Predicated region
        $region41: #{baseline_head.1} parent=31 // pred_check
          %p200 = pneg %p84
        $region42: #{baseline_head.1} parent=31 // pred_check_branch
          %202 = sbr.rel (%p200) target = $region44
        $region43: #{baseline_head.1} parent=31 // pred_region
          %204 = dma.done [#allocation6], 16
        $region44: #{baseline_head.1} parent=31 // pred_fallthru
          _
        %s205 = sand.u32 %s29, 1
        %s206 = scalar_lea.sflag [#allocation3], %s205
        %s207 = sand.u32 %s29, 1
        %s208 = smul.addr %s207, 2048
        %s209 = scalar_lea.vmem [#allocation2], %s208
        %p210 = pneg %p42
        %p211 = pneg %p39
        %p212 = pneg %p63
        %p213 = pneg %p60
        %p214 = pneg %p84
        %p215 = pneg %p81
        %p216 = pneg %p110
        %p217 = pneg %p107
        %s218 = sand.u32 %s97, 1
        %s219 = scalar_lea.sflag [#allocation4], %s218
        %s220 = sand.u32 %s97, 1
        %s221 = smul.addr %s220, 8
        %s222 = scalar_lea.vmem [#allocation8], %s221
        %s223 = smul.u32 8, %s21
        %v224 = vld [vmem:[%s189] sm:$0xff]
        %v225 = vld [vmem:[%s189 + $0x8] sm:$0xff]
        %v226 = vld [vmem:[%s189 + $0x10] sm:$0xff]
        %v227 = vld [vmem:[%s189 + $0x18] sm:$0xff]
        %v228 = vld [vmem:[%s189 + $0x20] sm:$0xff]
        %v229 = vld [vmem:[%s189 + $0x28] sm:$0xff]
        %v230 = vld [vmem:[%s189 + $0x30] sm:$0xff]
        %v231 = vld [vmem:[%s189 + $0x38] sm:$0xff]
        %v232 = vld [vmem:[%s189 + $0x40] sm:$0xff]
        %v233 = vld [vmem:[%s189 + $0x48] sm:$0xff]
        %v234 = vld [vmem:[%s189 + $0x50] sm:$0xff]
        %v235 = vld [vmem:[%s189 + $0x58] sm:$0xff]
        %v236 = vld [vmem:[%s189 + $0x60] sm:$0xff]
        %v237 = vld [vmem:[%s189 + $0x68] sm:$0xff]
        %v238 = vld [vmem:[%s189 + $0x70] sm:$0xff]
        %v239 = vld [vmem:[%s189 + $0x78] sm:$0xff]
        %v240 = vld [vmem:[%s189 + $0x80] sm:$0xff]
        %v241 = vld [vmem:[%s189 + $0x88] sm:$0xff]
        %v242 = vld [vmem:[%s189 + $0x90] sm:$0xff]
        %v243 = vld [vmem:[%s189 + $0x98] sm:$0xff]
        %v244 = vld [vmem:[%s189 + $0xa0] sm:$0xff]
        %v245 = vld [vmem:[%s189 + $0xa8] sm:$0xff]
        %v246 = vld [vmem:[%s189 + $0xb0] sm:$0xff]
        %v247 = vld [vmem:[%s189 + $0xb8] sm:$0xff]
        %v248 = vld [vmem:[%s189 + $0xc0] sm:$0xff]
        %v249 = vld [vmem:[%s189 + $0xc8] sm:$0xff]
        %v250 = vld [vmem:[%s189 + $0xd0] sm:$0xff]
        %v251 = vld [vmem:[%s189 + $0xd8] sm:$0xff]
        %v252 = vld [vmem:[%s189 + $0xe0] sm:$0xff]
        %v253 = vld [vmem:[%s189 + $0xe8] sm:$0xff]
        %v254 = vld [vmem:[%s189 + $0xf0] sm:$0xff]
        %v255 = vld [vmem:[%s189 + $0xf8] sm:$0xff]
        %v256 = vld [vmem:[%s189 + $0x100] sm:$0xff]
        %v257 = vld [vmem:[%s189 + $0x108] sm:$0xff]
        %v258 = vld [vmem:[%s189 + $0x110] sm:$0xff]
        %v259 = vld [vmem:[%s189 + $0x118] sm:$0xff]
        %v260 = vld [vmem:[%s189 + $0x120] sm:$0xff]
        %v261 = vld [vmem:[%s189 + $0x128] sm:$0xff]
        %v262 = vld [vmem:[%s189 + $0x130] sm:$0xff]
        %v263 = vld [vmem:[%s189 + $0x138] sm:$0xff]
        %v264 = vld [vmem:[%s189 + $0x140] sm:$0xff]
        %v265 = vld [vmem:[%s189 + $0x148] sm:$0xff]
        %v266 = vld [vmem:[%s189 + $0x150] sm:$0xff]
        %v267 = vld [vmem:[%s189 + $0x158] sm:$0xff]
        %v268 = vld [vmem:[%s189 + $0x160] sm:$0xff]
        %v269 = vld [vmem:[%s189 + $0x168] sm:$0xff]
        %v270 = vld [vmem:[%s189 + $0x170] sm:$0xff]
        %v271 = vld [vmem:[%s189 + $0x178] sm:$0xff]
        %v272 = vld [vmem:[%s189 + $0x180] sm:$0xff]
        %v273 = vld [vmem:[%s189 + $0x188] sm:$0xff]
        %v274 = vld [vmem:[%s189 + $0x190] sm:$0xff]
        %v275 = vld [vmem:[%s189 + $0x198] sm:$0xff]
        %v276 = vld [vmem:[%s189 + $0x1a0] sm:$0xff]
        %v277 = vld [vmem:[%s189 + $0x1a8] sm:$0xff]
        %v278 = vld [vmem:[%s189 + $0x1b0] sm:$0xff]
        %v279 = vld [vmem:[%s189 + $0x1b8] sm:$0xff]
        %v280 = vld [vmem:[%s189 + $0x1c0] sm:$0xff]
        %v281 = vld [vmem:[%s189 + $0x1c8] sm:$0xff]
        %v282 = vld [vmem:[%s189 + $0x1d0] sm:$0xff]
        %v283 = vld [vmem:[%s189 + $0x1d8] sm:$0xff]
        %v284 = vld [vmem:[%s189 + $0x1e0] sm:$0xff]
        %v285 = vld [vmem:[%s189 + $0x1e8] sm:$0xff]
        %v286 = vld [vmem:[%s189 + $0x1f0] sm:$0xff]
        %v287 = vld [vmem:[%s189 + $0x1f8] sm:$0xff]
        %v288 = vld [vmem:[%s189 + $0x200] sm:$0xff]
        %v289 = vld [vmem:[%s189 + $0x208] sm:$0xff]
        %v290 = vld [vmem:[%s189 + $0x210] sm:$0xff]
        %v291 = vld [vmem:[%s189 + $0x218] sm:$0xff]
        %v292 = vld [vmem:[%s189 + $0x220] sm:$0xff]
        %v293 = vld [vmem:[%s189 + $0x228] sm:$0xff]
        %v294 = vld [vmem:[%s189 + $0x230] sm:$0xff]
        %v295 = vld [vmem:[%s189 + $0x238] sm:$0xff]
        %v296 = vld [vmem:[%s189 + $0x240] sm:$0xff]
        %v297 = vld [vmem:[%s189 + $0x248] sm:$0xff]
        %v298 = vld [vmem:[%s189 + $0x250] sm:$0xff]
        %v299 = vld [vmem:[%s189 + $0x258] sm:$0xff]
        %v300 = vld [vmem:[%s189 + $0x260] sm:$0xff]
        %v301 = vld [vmem:[%s189 + $0x268] sm:$0xff]
        %v302 = vld [vmem:[%s189 + $0x270] sm:$0xff]
        %v303 = vld [vmem:[%s189 + $0x278] sm:$0xff]
        %v304 = vld [vmem:[%s189 + $0x280] sm:$0xff]
        %v305 = vld [vmem:[%s189 + $0x288] sm:$0xff]
        %v306 = vld [vmem:[%s189 + $0x290] sm:$0xff]
        %v307 = vld [vmem:[%s189 + $0x298] sm:$0xff]
        %v308 = vld [vmem:[%s189 + $0x2a0] sm:$0xff]
        %v309 = vld [vmem:[%s189 + $0x2a8] sm:$0xff]
        %v310 = vld [vmem:[%s189 + $0x2b0] sm:$0xff]
        %v311 = vld [vmem:[%s189 + $0x2b8] sm:$0xff]
        %v312 = vld [vmem:[%s189 + $0x2c0] sm:$0xff]
        %v313 = vld [vmem:[%s189 + $0x2c8] sm:$0xff]
        %v314 = vld [vmem:[%s189 + $0x2d0] sm:$0xff]
        %v315 = vld [vmem:[%s189 + $0x2d8] sm:$0xff]
        %v316 = vld [vmem:[%s189 + $0x2e0] sm:$0xff]
        %v317 = vld [vmem:[%s189 + $0x2e8] sm:$0xff]
        %v318 = vld [vmem:[%s189 + $0x2f0] sm:$0xff]
        %v319 = vld [vmem:[%s189 + $0x2f8] sm:$0xff]
        %v320 = vld [vmem:[%s189 + $0x300] sm:$0xff]
        %v321 = vld [vmem:[%s189 + $0x308] sm:$0xff]
        %v322 = vld [vmem:[%s189 + $0x310] sm:$0xff]
        %v323 = vld [vmem:[%s189 + $0x318] sm:$0xff]
        %v324 = vld [vmem:[%s189 + $0x320] sm:$0xff]
        %v325 = vld [vmem:[%s189 + $0x328] sm:$0xff]
        %v326 = vld [vmem:[%s189 + $0x330] sm:$0xff]
        %v327 = vld [vmem:[%s189 + $0x338] sm:$0xff]
        %v328 = vld [vmem:[%s189 + $0x340] sm:$0xff]
        %v329 = vld [vmem:[%s189 + $0x348] sm:$0xff]
        %v330 = vld [vmem:[%s189 + $0x350] sm:$0xff]
        %v331 = vld [vmem:[%s189 + $0x358] sm:$0xff]
        %v332 = vld [vmem:[%s189 + $0x360] sm:$0xff]
        %v333 = vld [vmem:[%s189 + $0x368] sm:$0xff]
        %v334 = vld [vmem:[%s189 + $0x370] sm:$0xff]
        %v335 = vld [vmem:[%s189 + $0x378] sm:$0xff]
        %v336 = vld [vmem:[%s189 + $0x380] sm:$0xff]
        %v337 = vld [vmem:[%s189 + $0x388] sm:$0xff]
        %v338 = vld [vmem:[%s189 + $0x390] sm:$0xff]
        %v339 = vld [vmem:[%s189 + $0x398] sm:$0xff]
        %v340 = vld [vmem:[%s189 + $0x3a0] sm:$0xff]
        %v341 = vld [vmem:[%s189 + $0x3a8] sm:$0xff]
        %v342 = vld [vmem:[%s189 + $0x3b0] sm:$0xff]
        %v343 = vld [vmem:[%s189 + $0x3b8] sm:$0xff]
        %v344 = vld [vmem:[%s189 + $0x3c0] sm:$0xff]
        %v345 = vld [vmem:[%s189 + $0x3c8] sm:$0xff]
        %v346 = vld [vmem:[%s189 + $0x3d0] sm:$0xff]
        %v347 = vld [vmem:[%s189 + $0x3d8] sm:$0xff]
        %v348 = vld [vmem:[%s189 + $0x3e0] sm:$0xff]
        %v349 = vld [vmem:[%s189 + $0x3e8] sm:$0xff]
        %v350 = vld [vmem:[%s189 + $0x3f0] sm:$0xff]
        %v351 = vld [vmem:[%s189 + $0x3f8] sm:$0xff]
        %v352 = vld [vmem:[%s189 + $0x400] sm:$0xff]
        %v353 = vld [vmem:[%s189 + $0x408] sm:$0xff]
        %v354 = vld [vmem:[%s189 + $0x410] sm:$0xff]
        %v355 = vld [vmem:[%s189 + $0x418] sm:$0xff]
        %v356 = vld [vmem:[%s189 + $0x420] sm:$0xff]
        %v357 = vld [vmem:[%s189 + $0x428] sm:$0xff]
        %v358 = vld [vmem:[%s189 + $0x430] sm:$0xff]
        %v359 = vld [vmem:[%s189 + $0x438] sm:$0xff]
        %v360 = vld [vmem:[%s189 + $0x440] sm:$0xff]
        %v361 = vld [vmem:[%s189 + $0x448] sm:$0xff]
        %v362 = vld [vmem:[%s189 + $0x450] sm:$0xff]
        %v363 = vld [vmem:[%s189 + $0x458] sm:$0xff]
        %v364 = vld [vmem:[%s189 + $0x460] sm:$0xff]
        %v365 = vld [vmem:[%s189 + $0x468] sm:$0xff]
        %v366 = vld [vmem:[%s189 + $0x470] sm:$0xff]
        %v367 = vld [vmem:[%s189 + $0x478] sm:$0xff]
        %v368 = vld [vmem:[%s189 + $0x480] sm:$0xff]
        %v369 = vld [vmem:[%s189 + $0x488] sm:$0xff]
        %v370 = vld [vmem:[%s189 + $0x490] sm:$0xff]
        %v371 = vld [vmem:[%s189 + $0x498] sm:$0xff]
        %v372 = vld [vmem:[%s189 + $0x4a0] sm:$0xff]
        %v373 = vld [vmem:[%s189 + $0x4a8] sm:$0xff]
        %v374 = vld [vmem:[%s189 + $0x4b0] sm:$0xff]
        %v375 = vld [vmem:[%s189 + $0x4b8] sm:$0xff]
        %v376 = vld [vmem:[%s189 + $0x4c0] sm:$0xff]
        %v377 = vld [vmem:[%s189 + $0x4c8] sm:$0xff]
        %v378 = vld [vmem:[%s189 + $0x4d0] sm:$0xff]
        %v379 = vld [vmem:[%s189 + $0x4d8] sm:$0xff]
        %v380 = vld [vmem:[%s189 + $0x4e0] sm:$0xff]
        %v381 = vld [vmem:[%s189 + $0x4e8] sm:$0xff]
        %v382 = vld [vmem:[%s189 + $0x4f0] sm:$0xff]
        %v383 = vld [vmem:[%s189 + $0x4f8] sm:$0xff]
        %v384 = vld [vmem:[%s189 + $0x500] sm:$0xff]
        %v385 = vld [vmem:[%s189 + $0x508] sm:$0xff]
        %v386 = vld [vmem:[%s189 + $0x510] sm:$0xff]
        %v387 = vld [vmem:[%s189 + $0x518] sm:$0xff]
        %v388 = vld [vmem:[%s189 + $0x520] sm:$0xff]
        %v389 = vld [vmem:[%s189 + $0x528] sm:$0xff]
        %v390 = vld [vmem:[%s189 + $0x530] sm:$0xff]
        %v391 = vld [vmem:[%s189 + $0x538] sm:$0xff]
        %v392 = vld [vmem:[%s189 + $0x540] sm:$0xff]
        %v393 = vld [vmem:[%s189 + $0x548] sm:$0xff]
        %v394 = vld [vmem:[%s189 + $0x550] sm:$0xff]
        %v395 = vld [vmem:[%s189 + $0x558] sm:$0xff]
        %v396 = vld [vmem:[%s189 + $0x560] sm:$0xff]
        %v397 = vld [vmem:[%s189 + $0x568] sm:$0xff]
        %v398 = vld [vmem:[%s189 + $0x570] sm:$0xff]
        %v399 = vld [vmem:[%s189 + $0x578] sm:$0xff]
        %v400 = vld [vmem:[%s189 + $0x580] sm:$0xff]
        %v401 = vld [vmem:[%s189 + $0x588] sm:$0xff]
        %v402 = vld [vmem:[%s189 + $0x590] sm:$0xff]
        %v403 = vld [vmem:[%s189 + $0x598] sm:$0xff]
        %v404 = vld [vmem:[%s189 + $0x5a0] sm:$0xff]
        %v405 = vld [vmem:[%s189 + $0x5a8] sm:$0xff]
        %v406 = vld [vmem:[%s189 + $0x5b0] sm:$0xff]
        %v407 = vld [vmem:[%s189 + $0x5b8] sm:$0xff]
        %v408 = vld [vmem:[%s189 + $0x5c0] sm:$0xff]
        %v409 = vld [vmem:[%s189 + $0x5c8] sm:$0xff]
        %v410 = vld [vmem:[%s189 + $0x5d0] sm:$0xff]
        %v411 = vld [vmem:[%s189 + $0x5d8] sm:$0xff]
        %v412 = vld [vmem:[%s189 + $0x5e0] sm:$0xff]
        %v413 = vld [vmem:[%s189 + $0x5e8] sm:$0xff]
        %v414 = vld [vmem:[%s189 + $0x5f0] sm:$0xff]
        %v415 = vld [vmem:[%s189 + $0x5f8] sm:$0xff]
        %v416 = vld [vmem:[%s189 + $0x600] sm:$0xff]
        %v417 = vld [vmem:[%s189 + $0x608] sm:$0xff]
        %v418 = vld [vmem:[%s189 + $0x610] sm:$0xff]
        %v419 = vld [vmem:[%s189 + $0x618] sm:$0xff]
        %v420 = vld [vmem:[%s189 + $0x620] sm:$0xff]
        %v421 = vld [vmem:[%s189 + $0x628] sm:$0xff]
        %v422 = vld [vmem:[%s189 + $0x630] sm:$0xff]
        %v423 = vld [vmem:[%s189 + $0x638] sm:$0xff]
        %v424 = vld [vmem:[%s189 + $0x640] sm:$0xff]
        %v425 = vld [vmem:[%s189 + $0x648] sm:$0xff]
        %v426 = vld [vmem:[%s189 + $0x650] sm:$0xff]
        %v427 = vld [vmem:[%s189 + $0x658] sm:$0xff]
        %v428 = vld [vmem:[%s189 + $0x660] sm:$0xff]
        %v429 = vld [vmem:[%s189 + $0x668] sm:$0xff]
        %v430 = vld [vmem:[%s189 + $0x670] sm:$0xff]
        %v431 = vld [vmem:[%s189 + $0x678] sm:$0xff]
        %v432 = vld [vmem:[%s189 + $0x680] sm:$0xff]
        %v433 = vld [vmem:[%s189 + $0x688] sm:$0xff]
        %v434 = vld [vmem:[%s189 + $0x690] sm:$0xff]
        %v435 = vld [vmem:[%s189 + $0x698] sm:$0xff]
        %v436 = vld [vmem:[%s189 + $0x6a0] sm:$0xff]
        %v437 = vld [vmem:[%s189 + $0x6a8] sm:$0xff]
        %v438 = vld [vmem:[%s189 + $0x6b0] sm:$0xff]
        %v439 = vld [vmem:[%s189 + $0x6b8] sm:$0xff]
        %v440 = vld [vmem:[%s189 + $0x6c0] sm:$0xff]
        %v441 = vld [vmem:[%s189 + $0x6c8] sm:$0xff]
        %v442 = vld [vmem:[%s189 + $0x6d0] sm:$0xff]
        %v443 = vld [vmem:[%s189 + $0x6d8] sm:$0xff]
        %v444 = vld [vmem:[%s189 + $0x6e0] sm:$0xff]
        %v445 = vld [vmem:[%s189 + $0x6e8] sm:$0xff]
        %v446 = vld [vmem:[%s189 + $0x6f0] sm:$0xff]
        %v447 = vld [vmem:[%s189 + $0x6f8] sm:$0xff]
        %v448 = vld [vmem:[%s189 + $0x700] sm:$0xff]
        %v449 = vld [vmem:[%s189 + $0x708] sm:$0xff]
        %v450 = vld [vmem:[%s189 + $0x710] sm:$0xff]
        %v451 = vld [vmem:[%s189 + $0x718] sm:$0xff]
        %v452 = vld [vmem:[%s189 + $0x720] sm:$0xff]
        %v453 = vld [vmem:[%s189 + $0x728] sm:$0xff]
        %v454 = vld [vmem:[%s189 + $0x730] sm:$0xff]
        %v455 = vld [vmem:[%s189 + $0x738] sm:$0xff]
        %v456 = vld [vmem:[%s189 + $0x740] sm:$0xff]
        %v457 = vld [vmem:[%s189 + $0x748] sm:$0xff]
        %v458 = vld [vmem:[%s189 + $0x750] sm:$0xff]
        %v459 = vld [vmem:[%s189 + $0x758] sm:$0xff]
        %v460 = vld [vmem:[%s189 + $0x760] sm:$0xff]
        %v461 = vld [vmem:[%s189 + $0x768] sm:$0xff]
        %v462 = vld [vmem:[%s189 + $0x770] sm:$0xff]
        %v463 = vld [vmem:[%s189 + $0x778] sm:$0xff]
        %v464 = vld [vmem:[%s189 + $0x780] sm:$0xff]
        %v465 = vld [vmem:[%s189 + $0x788] sm:$0xff]
        %v466 = vld [vmem:[%s189 + $0x790] sm:$0xff]
        %v467 = vld [vmem:[%s189 + $0x798] sm:$0xff]
        %v468 = vld [vmem:[%s189 + $0x7a0] sm:$0xff]
        %v469 = vld [vmem:[%s189 + $0x7a8] sm:$0xff]
        %v470 = vld [vmem:[%s189 + $0x7b0] sm:$0xff]
        %v471 = vld [vmem:[%s189 + $0x7b8] sm:$0xff]
        %v472 = vld [vmem:[%s189 + $0x7c0] sm:$0xff]
        %v473 = vld [vmem:[%s189 + $0x7c8] sm:$0xff]
        %v474 = vld [vmem:[%s189 + $0x7d0] sm:$0xff]
        %v475 = vld [vmem:[%s189 + $0x7d8] sm:$0xff]
        %v476 = vld [vmem:[%s189 + $0x7e0] sm:$0xff]
        %v477 = vld [vmem:[%s189 + $0x7e8] sm:$0xff]
        %v478 = vld [vmem:[%s189 + $0x7f0] sm:$0xff]
        %v479 = vld [vmem:[%s189 + $0x7f8] sm:$0xff]
        %v480 = vadd.f32 %v224, %v228
        %v481 = vadd.f32 %v480, %v232
        %v482 = vadd.f32 %v481, %v236
        %v483 = vadd.f32 %v482, %v240
        %v484 = vadd.f32 %v483, %v244
        %v485 = vadd.f32 %v484, %v248
        %v486 = vadd.f32 %v485, %v252
        %v487 = vrot.slane %v486, 4
        %v488 = vadd.f32 %v486, %v487
        %v489 = vrot.slane %v488, 2
        %v490 = vadd.f32 %v488, %v489
        %v491 = vrot.slane %v490, 1
        %v492 = vadd.f32 %v490, %v491
        %v493 = vadd.f32 %v225, %v229
        %v494 = vadd.f32 %v493, %v233
        %v495 = vadd.f32 %v494, %v237
        %v496 = vadd.f32 %v495, %v241
        %v497 = vadd.f32 %v496, %v245
        %v498 = vadd.f32 %v497, %v249
        %v499 = vadd.f32 %v498, %v253
        %v500 = vrot.slane %v499, 4
        %v501 = vadd.f32 %v499, %v500
        %v502 = vrot.slane %v501, 2
        %v503 = vadd.f32 %v501, %v502
        %v504 = vrot.slane %v503, 1
        %v505 = vadd.f32 %v503, %v504
        %v506 = vadd.f32 %v226, %v230
        %v507 = vadd.f32 %v506, %v234
        %v508 = vadd.f32 %v507, %v238
        %v509 = vadd.f32 %v508, %v242
        %v510 = vadd.f32 %v509, %v246
        %v511 = vadd.f32 %v510, %v250
        %v512 = vadd.f32 %v511, %v254
        %v513 = vrot.slane %v512, 4
        %v514 = vadd.f32 %v512, %v513
        %v515 = vrot.slane %v514, 2
        %v516 = vadd.f32 %v514, %v515
        %v517 = vrot.slane %v516, 1
        %v518 = vadd.f32 %v516, %v517
        %v519 = vadd.f32 %v227, %v231
        %v520 = vadd.f32 %v519, %v235
        %v521 = vadd.f32 %v520, %v239
        %v522 = vadd.f32 %v521, %v243
        %v523 = vadd.f32 %v522, %v247
        %v524 = vadd.f32 %v523, %v251
        %v525 = vadd.f32 %v524, %v255
        %v526 = vrot.slane %v525, 4
        %v527 = vadd.f32 %v525, %v526
        %v528 = vrot.slane %v527, 2
        %v529 = vadd.f32 %v527, %v528
        %v530 = vrot.slane %v529, 1
        %v531 = vadd.f32 %v529, %v530
        %v532 = vadd.f32 %v256, %v260
        %v533 = vadd.f32 %v532, %v264
        %v534 = vadd.f32 %v533, %v268
        %v535 = vadd.f32 %v534, %v272
        %v536 = vadd.f32 %v535, %v276
        %v537 = vadd.f32 %v536, %v280
        %v538 = vadd.f32 %v537, %v284
        %v539 = vrot.slane %v538, 4
        %v540 = vadd.f32 %v538, %v539
        %v541 = vrot.slane %v540, 2
        %v542 = vadd.f32 %v540, %v541
        %v543 = vrot.slane %v542, 1
        %v544 = vadd.f32 %v542, %v543
        %v545 = vadd.f32 %v257, %v261
        %v546 = vadd.f32 %v545, %v265
        %v547 = vadd.f32 %v546, %v269
        %v548 = vadd.f32 %v547, %v273
        %v549 = vadd.f32 %v548, %v277
        %v550 = vadd.f32 %v549, %v281
        %v551 = vadd.f32 %v550, %v285
        %v552 = vrot.slane %v551, 4
        %v553 = vadd.f32 %v551, %v552
        %v554 = vrot.slane %v553, 2
        %v555 = vadd.f32 %v553, %v554
        %v556 = vrot.slane %v555, 1
        %v557 = vadd.f32 %v555, %v556
        %v558 = vadd.f32 %v258, %v262
        %v559 = vadd.f32 %v558, %v266
        %v560 = vadd.f32 %v559, %v270
        %v561 = vadd.f32 %v560, %v274
        %v562 = vadd.f32 %v561, %v278
        %v563 = vadd.f32 %v562, %v282
        %v564 = vadd.f32 %v563, %v286
        %v565 = vrot.slane %v564, 4
        %v566 = vadd.f32 %v564, %v565
        %v567 = vrot.slane %v566, 2
        %v568 = vadd.f32 %v566, %v567
        %v569 = vrot.slane %v568, 1
        %v570 = vadd.f32 %v568, %v569
        %v571 = vadd.f32 %v259, %v263
        %v572 = vadd.f32 %v571, %v267
        %v573 = vadd.f32 %v572, %v271
        %v574 = vadd.f32 %v573, %v275
        %v575 = vadd.f32 %v574, %v279
        %v576 = vadd.f32 %v575, %v283
        %v577 = vadd.f32 %v576, %v287
        %v578 = vrot.slane %v577, 4
        %v579 = vadd.f32 %v577, %v578
        %v580 = vrot.slane %v579, 2
        %v581 = vadd.f32 %v579, %v580
        %v582 = vrot.slane %v581, 1
        %v583 = vadd.f32 %v581, %v582
        %v584 = vadd.f32 %v288, %v292
        %v585 = vadd.f32 %v584, %v296
        %v586 = vadd.f32 %v585, %v300
        %v587 = vadd.f32 %v586, %v304
        %v588 = vadd.f32 %v587, %v308
        %v589 = vadd.f32 %v588, %v312
        %v590 = vadd.f32 %v589, %v316
        %v591 = vrot.slane %v590, 4
        %v592 = vadd.f32 %v590, %v591
        %v593 = vrot.slane %v592, 2
        %v594 = vadd.f32 %v592, %v593
        %v595 = vrot.slane %v594, 1
        %v596 = vadd.f32 %v594, %v595
        %v597 = vadd.f32 %v289, %v293
        %v598 = vadd.f32 %v597, %v297
        %v599 = vadd.f32 %v598, %v301
        %v600 = vadd.f32 %v599, %v305
        %v601 = vadd.f32 %v600, %v309
        %v602 = vadd.f32 %v601, %v313
        %v603 = vadd.f32 %v602, %v317
        %v604 = vrot.slane %v603, 4
        %v605 = vadd.f32 %v603, %v604
        %v606 = vrot.slane %v605, 2
        %v607 = vadd.f32 %v605, %v606
        %v608 = vrot.slane %v607, 1
        %v609 = vadd.f32 %v607, %v608
        %v610 = vadd.f32 %v290, %v294
        %v611 = vadd.f32 %v610, %v298
        %v612 = vadd.f32 %v611, %v302
        %v613 = vadd.f32 %v612, %v306
        %v614 = vadd.f32 %v613, %v310
        %v615 = vadd.f32 %v614, %v314
        %v616 = vadd.f32 %v615, %v318
        %v617 = vrot.slane %v616, 4
        %v618 = vadd.f32 %v616, %v617
        %v619 = vrot.slane %v618, 2
        %v620 = vadd.f32 %v618, %v619
        %v621 = vrot.slane %v620, 1
        %v622 = vadd.f32 %v620, %v621
        %v623 = vadd.f32 %v291, %v295
        %v624 = vadd.f32 %v623, %v299
        %v625 = vadd.f32 %v624, %v303
        %v626 = vadd.f32 %v625, %v307
        %v627 = vadd.f32 %v626, %v311
        %v628 = vadd.f32 %v627, %v315
        %v629 = vadd.f32 %v628, %v319
        %v630 = vrot.slane %v629, 4
        %v631 = vadd.f32 %v629, %v630
        %v632 = vrot.slane %v631, 2
        %v633 = vadd.f32 %v631, %v632
        %v634 = vrot.slane %v633, 1
        %v635 = vadd.f32 %v633, %v634
        %v636 = vadd.f32 %v320, %v324
        %v637 = vadd.f32 %v636, %v328
        %v638 = vadd.f32 %v637, %v332
        %v639 = vadd.f32 %v638, %v336
        %v640 = vadd.f32 %v639, %v340
        %v641 = vadd.f32 %v640, %v344
        %v642 = vadd.f32 %v641, %v348
        %v643 = vrot.slane %v642, 4
        %v644 = vadd.f32 %v642, %v643
        %v645 = vrot.slane %v644, 2
        %v646 = vadd.f32 %v644, %v645
        %v647 = vrot.slane %v646, 1
        %v648 = vadd.f32 %v646, %v647
        %v649 = vadd.f32 %v321, %v325
        %v650 = vadd.f32 %v649, %v329
        %v651 = vadd.f32 %v650, %v333
        %v652 = vadd.f32 %v651, %v337
        %v653 = vadd.f32 %v652, %v341
        %v654 = vadd.f32 %v653, %v345
        %v655 = vadd.f32 %v654, %v349
        %v656 = vrot.slane %v655, 4
        %v657 = vadd.f32 %v655, %v656
        %v658 = vrot.slane %v657, 2
        %v659 = vadd.f32 %v657, %v658
        %v660 = vrot.slane %v659, 1
        %v661 = vadd.f32 %v659, %v660
        %v662 = vadd.f32 %v322, %v326
        %v663 = vadd.f32 %v662, %v330
        %v664 = vadd.f32 %v663, %v334
        %v665 = vadd.f32 %v664, %v338
        %v666 = vadd.f32 %v665, %v342
        %v667 = vadd.f32 %v666, %v346
        %v668 = vadd.f32 %v667, %v350
        %v669 = vrot.slane %v668, 4
        %v670 = vadd.f32 %v668, %v669
        %v671 = vrot.slane %v670, 2
        %v672 = vadd.f32 %v670, %v671
        %v673 = vrot.slane %v672, 1
        %v674 = vadd.f32 %v672, %v673
        %v675 = vadd.f32 %v323, %v327
        %v676 = vadd.f32 %v675, %v331
        %v677 = vadd.f32 %v676, %v335
        %v678 = vadd.f32 %v677, %v339
        %v679 = vadd.f32 %v678, %v343
        %v680 = vadd.f32 %v679, %v347
        %v681 = vadd.f32 %v680, %v351
        %v682 = vrot.slane %v681, 4
        %v683 = vadd.f32 %v681, %v682
        %v684 = vrot.slane %v683, 2
        %v685 = vadd.f32 %v683, %v684
        %v686 = vrot.slane %v685, 1
        %v687 = vadd.f32 %v685, %v686
        %v688 = vadd.f32 %v352, %v356
        %v689 = vadd.f32 %v688, %v360
        %v690 = vadd.f32 %v689, %v364
        %v691 = vadd.f32 %v690, %v368
        %v692 = vadd.f32 %v691, %v372
        %v693 = vadd.f32 %v692, %v376
        %v694 = vadd.f32 %v693, %v380
        %v695 = vrot.slane %v694, 4
        %v696 = vadd.f32 %v694, %v695
        %v697 = vrot.slane %v696, 2
        %v698 = vadd.f32 %v696, %v697
        %v699 = vrot.slane %v698, 1
        %v700 = vadd.f32 %v698, %v699
        %v701 = vadd.f32 %v353, %v357
        %v702 = vadd.f32 %v701, %v361
        %v703 = vadd.f32 %v702, %v365
        %v704 = vadd.f32 %v703, %v369
        %v705 = vadd.f32 %v704, %v373
        %v706 = vadd.f32 %v705, %v377
        %v707 = vadd.f32 %v706, %v381
        %v708 = vrot.slane %v707, 4
        %v709 = vadd.f32 %v707, %v708
        %v710 = vrot.slane %v709, 2
        %v711 = vadd.f32 %v709, %v710
        %v712 = vrot.slane %v711, 1
        %v713 = vadd.f32 %v711, %v712
        %v714 = vadd.f32 %v354, %v358
        %v715 = vadd.f32 %v714, %v362
        %v716 = vadd.f32 %v715, %v366
        %v717 = vadd.f32 %v716, %v370
        %v718 = vadd.f32 %v717, %v374
        %v719 = vadd.f32 %v718, %v378
        %v720 = vadd.f32 %v719, %v382
        %v721 = vrot.slane %v720, 4
        %v722 = vadd.f32 %v720, %v721
        %v723 = vrot.slane %v722, 2
        %v724 = vadd.f32 %v722, %v723
        %v725 = vrot.slane %v724, 1
        %v726 = vadd.f32 %v724, %v725
        %v727 = vadd.f32 %v355, %v359
        %v728 = vadd.f32 %v727, %v363
        %v729 = vadd.f32 %v728, %v367
        %v730 = vadd.f32 %v729, %v371
        %v731 = vadd.f32 %v730, %v375
        %v732 = vadd.f32 %v731, %v379
        %v733 = vadd.f32 %v732, %v383
        %v734 = vrot.slane %v733, 4
        %v735 = vadd.f32 %v733, %v734
        %v736 = vrot.slane %v735, 2
        %v737 = vadd.f32 %v735, %v736
        %v738 = vrot.slane %v737, 1
        %v739 = vadd.f32 %v737, %v738
        %v740 = vadd.f32 %v384, %v388
        %v741 = vadd.f32 %v740, %v392
        %v742 = vadd.f32 %v741, %v396
        %v743 = vadd.f32 %v742, %v400
        %v744 = vadd.f32 %v743, %v404
        %v745 = vadd.f32 %v744, %v408
        %v746 = vadd.f32 %v745, %v412
        %v747 = vrot.slane %v746, 4
        %v748 = vadd.f32 %v746, %v747
        %v749 = vrot.slane %v748, 2
        %v750 = vadd.f32 %v748, %v749
        %v751 = vrot.slane %v750, 1
        %v752 = vadd.f32 %v750, %v751
        %v753 = vadd.f32 %v385, %v389
        %v754 = vadd.f32 %v753, %v393
        %v755 = vadd.f32 %v754, %v397
        %v756 = vadd.f32 %v755, %v401
        %v757 = vadd.f32 %v756, %v405
        %v758 = vadd.f32 %v757, %v409
        %v759 = vadd.f32 %v758, %v413
        %v760 = vrot.slane %v759, 4
        %v761 = vadd.f32 %v759, %v760
        %v762 = vrot.slane %v761, 2
        %v763 = vadd.f32 %v761, %v762
        %v764 = vrot.slane %v763, 1
        %v765 = vadd.f32 %v763, %v764
        %v766 = vadd.f32 %v386, %v390
        %v767 = vadd.f32 %v766, %v394
        %v768 = vadd.f32 %v767, %v398
        %v769 = vadd.f32 %v768, %v402
        %v770 = vadd.f32 %v769, %v406
        %v771 = vadd.f32 %v770, %v410
        %v772 = vadd.f32 %v771, %v414
        %v773 = vrot.slane %v772, 4
        %v774 = vadd.f32 %v772, %v773
        %v775 = vrot.slane %v774, 2
        %v776 = vadd.f32 %v774, %v775
        %v777 = vrot.slane %v776, 1
        %v778 = vadd.f32 %v776, %v777
        %v779 = vadd.f32 %v387, %v391
        %v780 = vadd.f32 %v779, %v395
        %v781 = vadd.f32 %v780, %v399
        %v782 = vadd.f32 %v781, %v403
        %v783 = vadd.f32 %v782, %v407
        %v784 = vadd.f32 %v783, %v411
        %v785 = vadd.f32 %v784, %v415
        %v786 = vrot.slane %v785, 4
        %v787 = vadd.f32 %v785, %v786
        %v788 = vrot.slane %v787, 2
        %v789 = vadd.f32 %v787, %v788
        %v790 = vrot.slane %v789, 1
        %v791 = vadd.f32 %v789, %v790
        %v792 = vadd.f32 %v416, %v420
        %v793 = vadd.f32 %v792, %v424
        %v794 = vadd.f32 %v793, %v428
        %v795 = vadd.f32 %v794, %v432
        %v796 = vadd.f32 %v795, %v436
        %v797 = vadd.f32 %v796, %v440
        %v798 = vadd.f32 %v797, %v444
        %v799 = vrot.slane %v798, 4
        %v800 = vadd.f32 %v798, %v799
        %v801 = vrot.slane %v800, 2
        %v802 = vadd.f32 %v800, %v801
        %v803 = vrot.slane %v802, 1
        %v804 = vadd.f32 %v802, %v803
        %v805 = vadd.f32 %v417, %v421
        %v806 = vadd.f32 %v805, %v425
        %v807 = vadd.f32 %v806, %v429
        %v808 = vadd.f32 %v807, %v433
        %v809 = vadd.f32 %v808, %v437
        %v810 = vadd.f32 %v809, %v441
        %v811 = vadd.f32 %v810, %v445
        %v812 = vrot.slane %v811, 4
        %v813 = vadd.f32 %v811, %v812
        %v814 = vrot.slane %v813, 2
        %v815 = vadd.f32 %v813, %v814
        %v816 = vrot.slane %v815, 1
        %v817 = vadd.f32 %v815, %v816
        %v818 = vadd.f32 %v418, %v422
        %v819 = vadd.f32 %v818, %v426
        %v820 = vadd.f32 %v819, %v430
        %v821 = vadd.f32 %v820, %v434
        %v822 = vadd.f32 %v821, %v438
        %v823 = vadd.f32 %v822, %v442
        %v824 = vadd.f32 %v823, %v446
        %v825 = vrot.slane %v824, 4
        %v826 = vadd.f32 %v824, %v825
        %v827 = vrot.slane %v826, 2
        %v828 = vadd.f32 %v826, %v827
        %v829 = vrot.slane %v828, 1
        %v830 = vadd.f32 %v828, %v829
        %v831 = vadd.f32 %v419, %v423
        %v832 = vadd.f32 %v831, %v427
        %v833 = vadd.f32 %v832, %v431
        %v834 = vadd.f32 %v833, %v435
        %v835 = vadd.f32 %v834, %v439
        %v836 = vadd.f32 %v835, %v443
        %v837 = vadd.f32 %v836, %v447
        %v838 = vrot.slane %v837, 4
        %v839 = vadd.f32 %v837, %v838
        %v840 = vrot.slane %v839, 2
        %v841 = vadd.f32 %v839, %v840
        %v842 = vrot.slane %v841, 1
        %v843 = vadd.f32 %v841, %v842
        %v844 = vadd.f32 %v448, %v452
        %v845 = vadd.f32 %v844, %v456
        %v846 = vadd.f32 %v845, %v460
        %v847 = vadd.f32 %v846, %v464
        %v848 = vadd.f32 %v847, %v468
        %v849 = vadd.f32 %v848, %v472
        %v850 = vadd.f32 %v849, %v476
        %v851 = vrot.slane %v850, 4
        %v852 = vadd.f32 %v850, %v851
        %v853 = vrot.slane %v852, 2
        %v854 = vadd.f32 %v852, %v853
        %v855 = vrot.slane %v854, 1
        %v856 = vadd.f32 %v854, %v855
        %v857 = vadd.f32 %v449, %v453
        %v858 = vadd.f32 %v857, %v457
        %v859 = vadd.f32 %v858, %v461
        %v860 = vadd.f32 %v859, %v465
        %v861 = vadd.f32 %v860, %v469
        %v862 = vadd.f32 %v861, %v473
        %v863 = vadd.f32 %v862, %v477
        %v864 = vrot.slane %v863, 4
        %v865 = vadd.f32 %v863, %v864
        %v866 = vrot.slane %v865, 2
        %v867 = vadd.f32 %v865, %v866
        %v868 = vrot.slane %v867, 1
        %v869 = vadd.f32 %v867, %v868
        %v870 = vadd.f32 %v450, %v454
        %v871 = vadd.f32 %v870, %v458
        %v872 = vadd.f32 %v871, %v462
        %v873 = vadd.f32 %v872, %v466
        %v874 = vadd.f32 %v873, %v470
        %v875 = vadd.f32 %v874, %v474
        %v876 = vadd.f32 %v875, %v478
        %v877 = vrot.slane %v876, 4
        %v878 = vadd.f32 %v876, %v877
        %v879 = vrot.slane %v878, 2
        %v880 = vadd.f32 %v878, %v879
        %v881 = vrot.slane %v880, 1
        %v882 = vadd.f32 %v880, %v881
        %v883 = vadd.f32 %v451, %v455
        %v884 = vadd.f32 %v883, %v459
        %v885 = vadd.f32 %v884, %v463
        %v886 = vadd.f32 %v885, %v467
        %v887 = vadd.f32 %v886, %v471
        %v888 = vadd.f32 %v887, %v475
        %v889 = vadd.f32 %v888, %v479
        %v890 = vrot.slane %v889, 4
        %v891 = vadd.f32 %v889, %v890
        %v892 = vrot.slane %v891, 2
        %v893 = vadd.f32 %v891, %v892
        %v894 = vrot.slane %v893, 1
        %v895 = vadd.f32 %v893, %v894
        %v896 = vmul.f32 %v492, 0.015625
        %v897 = vmul.f32 %v505, 0.015625
        %v898 = vmul.f32 %v518, 0.015625
        %v899 = vmul.f32 %v531, 0.015625
        %v900 = vmul.f32 %v544, 0.015625
        %v901 = vmul.f32 %v557, 0.015625
        %v902 = vmul.f32 %v570, 0.015625
        %v903 = vmul.f32 %v583, 0.015625
        %v904 = vmul.f32 %v596, 0.015625
        %v905 = vmul.f32 %v609, 0.015625
        %v906 = vmul.f32 %v622, 0.015625
        %v907 = vmul.f32 %v635, 0.015625
        %v908 = vmul.f32 %v648, 0.015625
        %v909 = vmul.f32 %v661, 0.015625
        %v910 = vmul.f32 %v674, 0.015625
        %v911 = vmul.f32 %v687, 0.015625
        %v912 = vmul.f32 %v700, 0.015625
        %v913 = vmul.f32 %v713, 0.015625
        %v914 = vmul.f32 %v726, 0.015625
        %v915 = vmul.f32 %v739, 0.015625
        %v916 = vmul.f32 %v752, 0.015625
        %v917 = vmul.f32 %v765, 0.015625
        %v918 = vmul.f32 %v778, 0.015625
        %v919 = vmul.f32 %v791, 0.015625
        %v920 = vmul.f32 %v804, 0.015625
        %v921 = vmul.f32 %v817, 0.015625
        %v922 = vmul.f32 %v830, 0.015625
        %v923 = vmul.f32 %v843, 0.015625
        %v924 = vmul.f32 %v856, 0.015625
        %v925 = vmul.f32 %v869, 0.015625
        %v926 = vmul.f32 %v882, 0.015625
        %v927 = vmul.f32 %v895, 0.015625
        %v928 = vmax.f32 %v224, %v228
        %v929 = vmax.f32 %v928, %v232
        %v930 = vmax.f32 %v929, %v236
        %v931 = vmax.f32 %v930, %v240
        %v932 = vmax.f32 %v931, %v244
        %v933 = vmax.f32 %v932, %v248
        %v934 = vmax.f32 %v933, %v252
        %v935 = vrot.slane %v934, 4
        %v936 = vmax.f32 %v934, %v935
        %v937 = vrot.slane %v936, 2
        %v938 = vmax.f32 %v936, %v937
        %v939 = vrot.slane %v938, 1
        %v940 = vmax.f32 %v938, %v939
        %v941 = vmax.f32 %v225, %v229
        %v942 = vmax.f32 %v941, %v233
        %v943 = vmax.f32 %v942, %v237
        %v944 = vmax.f32 %v943, %v241
        %v945 = vmax.f32 %v944, %v245
        %v946 = vmax.f32 %v945, %v249
        %v947 = vmax.f32 %v946, %v253
        %v948 = vrot.slane %v947, 4
        %v949 = vmax.f32 %v947, %v948
        %v950 = vrot.slane %v949, 2
        %v951 = vmax.f32 %v949, %v950
        %v952 = vrot.slane %v951, 1
        %v953 = vmax.f32 %v951, %v952
        %v954 = vmax.f32 %v226, %v230
        %v955 = vmax.f32 %v954, %v234
        %v956 = vmax.f32 %v955, %v238
        %v957 = vmax.f32 %v956, %v242
        %v958 = vmax.f32 %v957, %v246
        %v959 = vmax.f32 %v958, %v250
        %v960 = vmax.f32 %v959, %v254
        %v961 = vrot.slane %v960, 4
        %v962 = vmax.f32 %v960, %v961
        %v963 = vrot.slane %v962, 2
        %v964 = vmax.f32 %v962, %v963
        %v965 = vrot.slane %v964, 1
        %v966 = vmax.f32 %v964, %v965
        %v967 = vmax.f32 %v227, %v231
        %v968 = vmax.f32 %v967, %v235
        %v969 = vmax.f32 %v968, %v239
        %v970 = vmax.f32 %v969, %v243
        %v971 = vmax.f32 %v970, %v247
        %v972 = vmax.f32 %v971, %v251
        %v973 = vmax.f32 %v972, %v255
        %v974 = vrot.slane %v973, 4
        %v975 = vmax.f32 %v973, %v974
        %v976 = vrot.slane %v975, 2
        %v977 = vmax.f32 %v975, %v976
        %v978 = vrot.slane %v977, 1
        %v979 = vmax.f32 %v977, %v978
        %v980 = vmax.f32 %v256, %v260
        %v981 = vmax.f32 %v980, %v264
        %v982 = vmax.f32 %v981, %v268
        %v983 = vmax.f32 %v982, %v272
        %v984 = vmax.f32 %v983, %v276
        %v985 = vmax.f32 %v984, %v280
        %v986 = vmax.f32 %v985, %v284
        %v987 = vrot.slane %v986, 4
        %v988 = vmax.f32 %v986, %v987
        %v989 = vrot.slane %v988, 2
        %v990 = vmax.f32 %v988, %v989
        %v991 = vrot.slane %v990, 1
        %v992 = vmax.f32 %v990, %v991
        %v993 = vmax.f32 %v257, %v261
        %v994 = vmax.f32 %v993, %v265
        %v995 = vmax.f32 %v994, %v269
        %v996 = vmax.f32 %v995, %v273
        %v997 = vmax.f32 %v996, %v277
        %v998 = vmax.f32 %v997, %v281
        %v999 = vmax.f32 %v998, %v285
        %v1000 = vrot.slane %v999, 4
        %v1001 = vmax.f32 %v999, %v1000
        %v1002 = vrot.slane %v1001, 2
        %v1003 = vmax.f32 %v1001, %v1002
        %v1004 = vrot.slane %v1003, 1
        %v1005 = vmax.f32 %v1003, %v1004
        %v1006 = vmax.f32 %v258, %v262
        %v1007 = vmax.f32 %v1006, %v266
        %v1008 = vmax.f32 %v1007, %v270
        %v1009 = vmax.f32 %v1008, %v274
        %v1010 = vmax.f32 %v1009, %v278
        %v1011 = vmax.f32 %v1010, %v282
        %v1012 = vmax.f32 %v1011, %v286
        %v1013 = vrot.slane %v1012, 4
        %v1014 = vmax.f32 %v1012, %v1013
        %v1015 = vrot.slane %v1014, 2
        %v1016 = vmax.f32 %v1014, %v1015
        %v1017 = vrot.slane %v1016, 1
        %v1018 = vmax.f32 %v1016, %v1017
        %v1019 = vmax.f32 %v259, %v263
        %v1020 = vmax.f32 %v1019, %v267
        %v1021 = vmax.f32 %v1020, %v271
        %v1022 = vmax.f32 %v1021, %v275
        %v1023 = vmax.f32 %v1022, %v279
        %v1024 = vmax.f32 %v1023, %v283
        %v1025 = vmax.f32 %v1024, %v287
        %v1026 = vrot.slane %v1025, 4
        %v1027 = vmax.f32 %v1025, %v1026
        %v1028 = vrot.slane %v1027, 2
        %v1029 = vmax.f32 %v1027, %v1028
        %v1030 = vrot.slane %v1029, 1
        %v1031 = vmax.f32 %v1029, %v1030
        %v1032 = vmax.f32 %v288, %v292
        %v1033 = vmax.f32 %v1032, %v296
        %v1034 = vmax.f32 %v1033, %v300
        %v1035 = vmax.f32 %v1034, %v304
        %v1036 = vmax.f32 %v1035, %v308
        %v1037 = vmax.f32 %v1036, %v312
        %v1038 = vmax.f32 %v1037, %v316
        %v1039 = vrot.slane %v1038, 4
        %v1040 = vmax.f32 %v1038, %v1039
        %v1041 = vrot.slane %v1040, 2
        %v1042 = vmax.f32 %v1040, %v1041
        %v1043 = vrot.slane %v1042, 1
        %v1044 = vmax.f32 %v1042, %v1043
        %v1045 = vmax.f32 %v289, %v293
        %v1046 = vmax.f32 %v1045, %v297
        %v1047 = vmax.f32 %v1046, %v301
        %v1048 = vmax.f32 %v1047, %v305
        %v1049 = vmax.f32 %v1048, %v309
        %v1050 = vmax.f32 %v1049, %v313
        %v1051 = vmax.f32 %v1050, %v317
        %v1052 = vrot.slane %v1051, 4
        %v1053 = vmax.f32 %v1051, %v1052
        %v1054 = vrot.slane %v1053, 2
        %v1055 = vmax.f32 %v1053, %v1054
        %v1056 = vrot.slane %v1055, 1
        %v1057 = vmax.f32 %v1055, %v1056
        %v1058 = vmax.f32 %v290, %v294
        %v1059 = vmax.f32 %v1058, %v298
        %v1060 = vmax.f32 %v1059, %v302
        %v1061 = vmax.f32 %v1060, %v306
        %v1062 = vmax.f32 %v1061, %v310
        %v1063 = vmax.f32 %v1062, %v314
        %v1064 = vmax.f32 %v1063, %v318
        %v1065 = vrot.slane %v1064, 4
        %v1066 = vmax.f32 %v1064, %v1065
        %v1067 = vrot.slane %v1066, 2
        %v1068 = vmax.f32 %v1066, %v1067
        %v1069 = vrot.slane %v1068, 1
        %v1070 = vmax.f32 %v1068, %v1069
        %v1071 = vmax.f32 %v291, %v295
        %v1072 = vmax.f32 %v1071, %v299
        %v1073 = vmax.f32 %v1072, %v303
        %v1074 = vmax.f32 %v1073, %v307
        %v1075 = vmax.f32 %v1074, %v311
        %v1076 = vmax.f32 %v1075, %v315
        %v1077 = vmax.f32 %v1076, %v319
        %v1078 = vrot.slane %v1077, 4
        %v1079 = vmax.f32 %v1077, %v1078
        %v1080 = vrot.slane %v1079, 2
        %v1081 = vmax.f32 %v1079, %v1080
        %v1082 = vrot.slane %v1081, 1
        %v1083 = vmax.f32 %v1081, %v1082
        %v1084 = vmax.f32 %v320, %v324
        %v1085 = vmax.f32 %v1084, %v328
        %v1086 = vmax.f32 %v1085, %v332
        %v1087 = vmax.f32 %v1086, %v336
        %v1088 = vmax.f32 %v1087, %v340
        %v1089 = vmax.f32 %v1088, %v344
        %v1090 = vmax.f32 %v1089, %v348
        %v1091 = vrot.slane %v1090, 4
        %v1092 = vmax.f32 %v1090, %v1091
        %v1093 = vrot.slane %v1092, 2
        %v1094 = vmax.f32 %v1092, %v1093
        %v1095 = vrot.slane %v1094, 1
        %v1096 = vmax.f32 %v1094, %v1095
        %v1097 = vmax.f32 %v321, %v325
        %v1098 = vmax.f32 %v1097, %v329
        %v1099 = vmax.f32 %v1098, %v333
        %v1100 = vmax.f32 %v1099, %v337
        %v1101 = vmax.f32 %v1100, %v341
        %v1102 = vmax.f32 %v1101, %v345
        %v1103 = vmax.f32 %v1102, %v349
        %v1104 = vrot.slane %v1103, 4
        %v1105 = vmax.f32 %v1103, %v1104
        %v1106 = vrot.slane %v1105, 2
        %v1107 = vmax.f32 %v1105, %v1106
        %v1108 = vrot.slane %v1107, 1
        %v1109 = vmax.f32 %v1107, %v1108
        %v1110 = vmax.f32 %v322, %v326
        %v1111 = vmax.f32 %v1110, %v330
        %v1112 = vmax.f32 %v1111, %v334
        %v1113 = vmax.f32 %v1112, %v338
        %v1114 = vmax.f32 %v1113, %v342
        %v1115 = vmax.f32 %v1114, %v346
        %v1116 = vmax.f32 %v1115, %v350
        %v1117 = vrot.slane %v1116, 4
        %v1118 = vmax.f32 %v1116, %v1117
        %v1119 = vrot.slane %v1118, 2
        %v1120 = vmax.f32 %v1118, %v1119
        %v1121 = vrot.slane %v1120, 1
        %v1122 = vmax.f32 %v1120, %v1121
        %v1123 = vmax.f32 %v323, %v327
        %v1124 = vmax.f32 %v1123, %v331
        %v1125 = vmax.f32 %v1124, %v335
        %v1126 = vmax.f32 %v1125, %v339
        %v1127 = vmax.f32 %v1126, %v343
        %v1128 = vmax.f32 %v1127, %v347
        %v1129 = vmax.f32 %v1128, %v351
        %v1130 = vrot.slane %v1129, 4
        %v1131 = vmax.f32 %v1129, %v1130
        %v1132 = vrot.slane %v1131, 2
        %v1133 = vmax.f32 %v1131, %v1132
        %v1134 = vrot.slane %v1133, 1
        %v1135 = vmax.f32 %v1133, %v1134
        %v1136 = vmax.f32 %v352, %v356
        %v1137 = vmax.f32 %v1136, %v360
        %v1138 = vmax.f32 %v1137, %v364
        %v1139 = vmax.f32 %v1138, %v368
        %v1140 = vmax.f32 %v1139, %v372
        %v1141 = vmax.f32 %v1140, %v376
        %v1142 = vmax.f32 %v1141, %v380
        %v1143 = vrot.slane %v1142, 4
        %v1144 = vmax.f32 %v1142, %v1143
        %v1145 = vrot.slane %v1144, 2
        %v1146 = vmax.f32 %v1144, %v1145
        %v1147 = vrot.slane %v1146, 1
        %v1148 = vmax.f32 %v1146, %v1147
        %v1149 = vmax.f32 %v353, %v357
        %v1150 = vmax.f32 %v1149, %v361
        %v1151 = vmax.f32 %v1150, %v365
        %v1152 = vmax.f32 %v1151, %v369
        %v1153 = vmax.f32 %v1152, %v373
        %v1154 = vmax.f32 %v1153, %v377
        %v1155 = vmax.f32 %v1154, %v381
        %v1156 = vrot.slane %v1155, 4
        %v1157 = vmax.f32 %v1155, %v1156
        %v1158 = vrot.slane %v1157, 2
        %v1159 = vmax.f32 %v1157, %v1158
        %v1160 = vrot.slane %v1159, 1
        %v1161 = vmax.f32 %v1159, %v1160
        %v1162 = vmax.f32 %v354, %v358
        %v1163 = vmax.f32 %v1162, %v362
        %v1164 = vmax.f32 %v1163, %v366
        %v1165 = vmax.f32 %v1164, %v370
        %v1166 = vmax.f32 %v1165, %v374
        %v1167 = vmax.f32 %v1166, %v378
        %v1168 = vmax.f32 %v1167, %v382
        %v1169 = vrot.slane %v1168, 4
        %v1170 = vmax.f32 %v1168, %v1169
        %v1171 = vrot.slane %v1170, 2
        %v1172 = vmax.f32 %v1170, %v1171
        %v1173 = vrot.slane %v1172, 1
        %v1174 = vmax.f32 %v1172, %v1173
        %v1175 = vmax.f32 %v355, %v359
        %v1176 = vmax.f32 %v1175, %v363
        %v1177 = vmax.f32 %v1176, %v367
        %v1178 = vmax.f32 %v1177, %v371
        %v1179 = vmax.f32 %v1178, %v375
        %v1180 = vmax.f32 %v1179, %v379
        %v1181 = vmax.f32 %v1180, %v383
        %v1182 = vrot.slane %v1181, 4
        %v1183 = vmax.f32 %v1181, %v1182
        %v1184 = vrot.slane %v1183, 2
        %v1185 = vmax.f32 %v1183, %v1184
        %v1186 = vrot.slane %v1185, 1
        %v1187 = vmax.f32 %v1185, %v1186
        %v1188 = vmax.f32 %v384, %v388
        %v1189 = vmax.f32 %v1188, %v392
        %v1190 = vmax.f32 %v1189, %v396
        %v1191 = vmax.f32 %v1190, %v400
        %v1192 = vmax.f32 %v1191, %v404
        %v1193 = vmax.f32 %v1192, %v408
        %v1194 = vmax.f32 %v1193, %v412
        %v1195 = vrot.slane %v1194, 4
        %v1196 = vmax.f32 %v1194, %v1195
        %v1197 = vrot.slane %v1196, 2
        %v1198 = vmax.f32 %v1196, %v1197
        %v1199 = vrot.slane %v1198, 1
        %v1200 = vmax.f32 %v1198, %v1199
        %v1201 = vmax.f32 %v385, %v389
        %v1202 = vmax.f32 %v1201, %v393
        %v1203 = vmax.f32 %v1202, %v397
        %v1204 = vmax.f32 %v1203, %v401
        %v1205 = vmax.f32 %v1204, %v405
        %v1206 = vmax.f32 %v1205, %v409
        %v1207 = vmax.f32 %v1206, %v413
        %v1208 = vrot.slane %v1207, 4
        %v1209 = vmax.f32 %v1207, %v1208
        %v1210 = vrot.slane %v1209, 2
        %v1211 = vmax.f32 %v1209, %v1210
        %v1212 = vrot.slane %v1211, 1
        %v1213 = vmax.f32 %v1211, %v1212
        %v1214 = vmax.f32 %v386, %v390
        %v1215 = vmax.f32 %v1214, %v394
        %v1216 = vmax.f32 %v1215, %v398
        %v1217 = vmax.f32 %v1216, %v402
        %v1218 = vmax.f32 %v1217, %v406
        %v1219 = vmax.f32 %v1218, %v410
        %v1220 = vmax.f32 %v1219, %v414
        %v1221 = vrot.slane %v1220, 4
        %v1222 = vmax.f32 %v1220, %v1221
        %v1223 = vrot.slane %v1222, 2
        %v1224 = vmax.f32 %v1222, %v1223
        %v1225 = vrot.slane %v1224, 1
        %v1226 = vmax.f32 %v1224, %v1225
        %v1227 = vmax.f32 %v387, %v391
        %v1228 = vmax.f32 %v1227, %v395
        %v1229 = vmax.f32 %v1228, %v399
        %v1230 = vmax.f32 %v1229, %v403
        %v1231 = vmax.f32 %v1230, %v407
        %v1232 = vmax.f32 %v1231, %v411
        %v1233 = vmax.f32 %v1232, %v415
        %v1234 = vrot.slane %v1233, 4
        %v1235 = vmax.f32 %v1233, %v1234
        %v1236 = vrot.slane %v1235, 2
        %v1237 = vmax.f32 %v1235, %v1236
        %v1238 = vrot.slane %v1237, 1
        %v1239 = vmax.f32 %v1237, %v1238
        %v1240 = vmax.f32 %v416, %v420
        %v1241 = vmax.f32 %v1240, %v424
        %v1242 = vmax.f32 %v1241, %v428
        %v1243 = vmax.f32 %v1242, %v432
        %v1244 = vmax.f32 %v1243, %v436
        %v1245 = vmax.f32 %v1244, %v440
        %v1246 = vmax.f32 %v1245, %v444
        %v1247 = vrot.slane %v1246, 4
        %v1248 = vmax.f32 %v1246, %v1247
        %v1249 = vrot.slane %v1248, 2
        %v1250 = vmax.f32 %v1248, %v1249
        %v1251 = vrot.slane %v1250, 1
        %v1252 = vmax.f32 %v1250, %v1251
        %v1253 = vmax.f32 %v417, %v421
        %v1254 = vmax.f32 %v1253, %v425
        %v1255 = vmax.f32 %v1254, %v429
        %v1256 = vmax.f32 %v1255, %v433
        %v1257 = vmax.f32 %v1256, %v437
        %v1258 = vmax.f32 %v1257, %v441
        %v1259 = vmax.f32 %v1258, %v445
        %v1260 = vrot.slane %v1259, 4
        %v1261 = vmax.f32 %v1259, %v1260
        %v1262 = vrot.slane %v1261, 2
        %v1263 = vmax.f32 %v1261, %v1262
        %v1264 = vrot.slane %v1263, 1
        %v1265 = vmax.f32 %v1263, %v1264
        %v1266 = vmax.f32 %v418, %v422
        %v1267 = vmax.f32 %v1266, %v426
        %v1268 = vmax.f32 %v1267, %v430
        %v1269 = vmax.f32 %v1268, %v434
        %v1270 = vmax.f32 %v1269, %v438
        %v1271 = vmax.f32 %v1270, %v442
        %v1272 = vmax.f32 %v1271, %v446
        %v1273 = vrot.slane %v1272, 4
        %v1274 = vmax.f32 %v1272, %v1273
        %v1275 = vrot.slane %v1274, 2
        %v1276 = vmax.f32 %v1274, %v1275
        %v1277 = vrot.slane %v1276, 1
        %v1278 = vmax.f32 %v1276, %v1277
        %v1279 = vmax.f32 %v419, %v423
        %v1280 = vmax.f32 %v1279, %v427
        %v1281 = vmax.f32 %v1280, %v431
        %v1282 = vmax.f32 %v1281, %v435
        %v1283 = vmax.f32 %v1282, %v439
        %v1284 = vmax.f32 %v1283, %v443
        %v1285 = vmax.f32 %v1284, %v447
        %v1286 = vrot.slane %v1285, 4
        %v1287 = vmax.f32 %v1285, %v1286
        %v1288 = vrot.slane %v1287, 2
        %v1289 = vmax.f32 %v1287, %v1288
        %v1290 = vrot.slane %v1289, 1
        %v1291 = vmax.f32 %v1289, %v1290
        %v1292 = vmax.f32 %v448, %v452
        %v1293 = vmax.f32 %v1292, %v456
        %v1294 = vmax.f32 %v1293, %v460
        %v1295 = vmax.f32 %v1294, %v464
        %v1296 = vmax.f32 %v1295, %v468
        %v1297 = vmax.f32 %v1296, %v472
        %v1298 = vmax.f32 %v1297, %v476
        %v1299 = vrot.slane %v1298, 4
        %v1300 = vmax.f32 %v1298, %v1299
        %v1301 = vrot.slane %v1300, 2
        %v1302 = vmax.f32 %v1300, %v1301
        %v1303 = vrot.slane %v1302, 1
        %v1304 = vmax.f32 %v1302, %v1303
        %v1305 = vmax.f32 %v449, %v453
        %v1306 = vmax.f32 %v1305, %v457
        %v1307 = vmax.f32 %v1306, %v461
        %v1308 = vmax.f32 %v1307, %v465
        %v1309 = vmax.f32 %v1308, %v469
        %v1310 = vmax.f32 %v1309, %v473
        %v1311 = vmax.f32 %v1310, %v477
        %v1312 = vrot.slane %v1311, 4
        %v1313 = vmax.f32 %v1311, %v1312
        %v1314 = vrot.slane %v1313, 2
        %v1315 = vmax.f32 %v1313, %v1314
        %v1316 = vrot.slane %v1315, 1
        %v1317 = vmax.f32 %v1315, %v1316
        %v1318 = vmax.f32 %v450, %v454
        %v1319 = vmax.f32 %v1318, %v458
        %v1320 = vmax.f32 %v1319, %v462
        %v1321 = vmax.f32 %v1320, %v466
        %v1322 = vmax.f32 %v1321, %v470
        %v1323 = vmax.f32 %v1322, %v474
        %v1324 = vmax.f32 %v1323, %v478
        %v1325 = vrot.slane %v1324, 4
        %v1326 = vmax.f32 %v1324, %v1325
        %v1327 = vrot.slane %v1326, 2
        %v1328 = vmax.f32 %v1326, %v1327
        %v1329 = vrot.slane %v1328, 1
        %v1330 = vmax.f32 %v1328, %v1329
        %v1331 = vmax.f32 %v451, %v455
        %v1332 = vmax.f32 %v1331, %v459
        %v1333 = vmax.f32 %v1332, %v463
        %v1334 = vmax.f32 %v1333, %v467
        %v1335 = vmax.f32 %v1334, %v471
        %v1336 = vmax.f32 %v1335, %v475
        %v1337 = vmax.f32 %v1336, %v479
        %v1338 = vrot.slane %v1337, 4
        %v1339 = vmax.f32 %v1337, %v1338
        %v1340 = vrot.slane %v1339, 2
        %v1341 = vmax.f32 %v1339, %v1340
        %v1342 = vrot.slane %v1341, 1
        %v1343 = vmax.f32 %v1341, %v1342
        %v1344 = vadd.f32 %v896, %v940
        %v1345 = vadd.f32 %v897, %v953
        %v1346 = vadd.f32 %v898, %v966
        %v1347 = vadd.f32 %v899, %v979
        %v1348 = vadd.f32 %v900, %v992
        %v1349 = vadd.f32 %v901, %v1005
        %v1350 = vadd.f32 %v902, %v1018
        %v1351 = vadd.f32 %v903, %v1031
        %v1352 = vadd.f32 %v904, %v1044
        %v1353 = vadd.f32 %v905, %v1057
        %v1354 = vadd.f32 %v906, %v1070
        %v1355 = vadd.f32 %v907, %v1083
        %v1356 = vadd.f32 %v908, %v1096
        %v1357 = vadd.f32 %v909, %v1109
        %v1358 = vadd.f32 %v910, %v1122
        %v1359 = vadd.f32 %v911, %v1135
        %v1360 = vadd.f32 %v912, %v1148
        %v1361 = vadd.f32 %v913, %v1161
        %v1362 = vadd.f32 %v914, %v1174
        %v1363 = vadd.f32 %v915, %v1187
        %v1364 = vadd.f32 %v916, %v1200
        %v1365 = vadd.f32 %v917, %v1213
        %v1366 = vadd.f32 %v918, %v1226
        %v1367 = vadd.f32 %v919, %v1239
        %v1368 = vadd.f32 %v920, %v1252
        %v1369 = vadd.f32 %v921, %v1265
        %v1370 = vadd.f32 %v922, %v1278
        %v1371 = vadd.f32 %v923, %v1291
        %v1372 = vadd.f32 %v924, %v1304
        %v1373 = vadd.f32 %v925, %v1317
        %v1374 = vadd.f32 %v926, %v1330
        %v1375 = vadd.f32 %v927, %v1343
        %v1376 = vld [vmem:[#allocation5] sm:$0xff]
        %v1377 = vld [vmem:[#allocation5 + $0x8] sm:$0xff]
        %v1378 = vld [vmem:[#allocation5 + $0x10] sm:$0xff]
        %v1379 = vld [vmem:[#allocation5 + $0x18] sm:$0xff]
        %v1380 = vld [vmem:[#allocation5 + $0x20] sm:$0xff]
        %v1381 = vld [vmem:[#allocation5 + $0x28] sm:$0xff]
        %v1382 = vld [vmem:[#allocation5 + $0x30] sm:$0xff]
        %v1383 = vld [vmem:[#allocation5 + $0x38] sm:$0xff]
        %v1384 = vld [vmem:[#allocation5 + $0x40] sm:$0xff]
        %v1385 = vld [vmem:[#allocation5 + $0x48] sm:$0xff]
        %v1386 = vld [vmem:[#allocation5 + $0x50] sm:$0xff]
        %v1387 = vld [vmem:[#allocation5 + $0x58] sm:$0xff]
        %v1388 = vld [vmem:[#allocation5 + $0x60] sm:$0xff]
        %v1389 = vld [vmem:[#allocation5 + $0x68] sm:$0xff]
        %v1390 = vld [vmem:[#allocation5 + $0x70] sm:$0xff]
        %v1391 = vld [vmem:[#allocation5 + $0x78] sm:$0xff]
        %v1392 = vld [vmem:[#allocation5 + $0x80] sm:$0xff]
        %v1393 = vld [vmem:[#allocation5 + $0x88] sm:$0xff]
        %v1394 = vld [vmem:[#allocation5 + $0x90] sm:$0xff]
        %v1395 = vld [vmem:[#allocation5 + $0x98] sm:$0xff]
        %v1396 = vld [vmem:[#allocation5 + $0xa0] sm:$0xff]
        %v1397 = vld [vmem:[#allocation5 + $0xa8] sm:$0xff]
        %v1398 = vld [vmem:[#allocation5 + $0xb0] sm:$0xff]
        %v1399 = vld [vmem:[#allocation5 + $0xb8] sm:$0xff]
        %v1400 = vld [vmem:[#allocation5 + $0xc0] sm:$0xff]
        %v1401 = vld [vmem:[#allocation5 + $0xc8] sm:$0xff]
        %v1402 = vld [vmem:[#allocation5 + $0xd0] sm:$0xff]
        %v1403 = vld [vmem:[#allocation5 + $0xd8] sm:$0xff]
        %v1404 = vld [vmem:[#allocation5 + $0xe0] sm:$0xff]
        %v1405 = vld [vmem:[#allocation5 + $0xe8] sm:$0xff]
        %v1406 = vld [vmem:[#allocation5 + $0xf0] sm:$0xff]
        %v1407 = vld [vmem:[#allocation5 + $0xf8] sm:$0xff]
        %v1408 = vld [vmem:[#allocation5 + $0x100] sm:$0xff]
        %v1409 = vld [vmem:[#allocation5 + $0x108] sm:$0xff]
        %v1410 = vld [vmem:[#allocation5 + $0x110] sm:$0xff]
        %v1411 = vld [vmem:[#allocation5 + $0x118] sm:$0xff]
        %v1412 = vld [vmem:[#allocation5 + $0x120] sm:$0xff]
        %v1413 = vld [vmem:[#allocation5 + $0x128] sm:$0xff]
        %v1414 = vld [vmem:[#allocation5 + $0x130] sm:$0xff]
        %v1415 = vld [vmem:[#allocation5 + $0x138] sm:$0xff]
        %v1416 = vld [vmem:[#allocation5 + $0x140] sm:$0xff]
        %v1417 = vld [vmem:[#allocation5 + $0x148] sm:$0xff]
        %v1418 = vld [vmem:[#allocation5 + $0x150] sm:$0xff]
        %v1419 = vld [vmem:[#allocation5 + $0x158] sm:$0xff]
        %v1420 = vld [vmem:[#allocation5 + $0x160] sm:$0xff]
        %v1421 = vld [vmem:[#allocation5 + $0x168] sm:$0xff]
        %v1422 = vld [vmem:[#allocation5 + $0x170] sm:$0xff]
        %v1423 = vld [vmem:[#allocation5 + $0x178] sm:$0xff]
        %v1424 = vld [vmem:[#allocation5 + $0x180] sm:$0xff]
        %v1425 = vld [vmem:[#allocation5 + $0x188] sm:$0xff]
        %v1426 = vld [vmem:[#allocation5 + $0x190] sm:$0xff]
        %v1427 = vld [vmem:[#allocation5 + $0x198] sm:$0xff]
        %v1428 = vld [vmem:[#allocation5 + $0x1a0] sm:$0xff]
        %v1429 = vld [vmem:[#allocation5 + $0x1a8] sm:$0xff]
        %v1430 = vld [vmem:[#allocation5 + $0x1b0] sm:$0xff]
        %v1431 = vld [vmem:[#allocation5 + $0x1b8] sm:$0xff]
        %v1432 = vld [vmem:[#allocation5 + $0x1c0] sm:$0xff]
        %v1433 = vld [vmem:[#allocation5 + $0x1c8] sm:$0xff]
        %v1434 = vld [vmem:[#allocation5 + $0x1d0] sm:$0xff]
        %v1435 = vld [vmem:[#allocation5 + $0x1d8] sm:$0xff]
        %v1436 = vld [vmem:[#allocation5 + $0x1e0] sm:$0xff]
        %v1437 = vld [vmem:[#allocation5 + $0x1e8] sm:$0xff]
        %v1438 = vld [vmem:[#allocation5 + $0x1f0] sm:$0xff]
        %v1439 = vld [vmem:[#allocation5 + $0x1f8] sm:$0xff]
        %v1440 = vld [vmem:[#allocation7] sm:$0x1]
        %v1442 = vperm.slane %v1440, 0
        %vm1476 = vcmask 1041409
        %v1477 = vsel %vm1476, %v1348, %v1344
        %vm1478 = vcmask 1042434
        %v1479 = vsel %vm1478, %v1352, %v1477
        %vm1480 = vcmask 1043459
        %v1481 = vsel %vm1480, %v1356, %v1479
        %vm1482 = vcmask 1044484
        %v1483 = vsel %vm1482, %v1360, %v1481
        %vm1484 = vcmask 1045509
        %v1485 = vsel %vm1484, %v1364, %v1483
        %vm1486 = vcmask 1046534
        %v1487 = vsel %vm1486, %v1368, %v1485
        %vm1488 = vcmask 1047559
        %v1489 = vsel %vm1488, %v1372, %v1487
        %v1490 = vsel %vm1476, %v1349, %v1345
        %v1491 = vsel %vm1478, %v1353, %v1490
        %v1492 = vsel %vm1480, %v1357, %v1491
        %v1493 = vsel %vm1482, %v1361, %v1492
        %v1494 = vsel %vm1484, %v1365, %v1493
        %v1495 = vsel %vm1486, %v1369, %v1494
        %v1496 = vsel %vm1488, %v1373, %v1495
        %v1497 = vsel %vm1476, %v1350, %v1346
        %v1498 = vsel %vm1478, %v1354, %v1497
        %v1499 = vsel %vm1480, %v1358, %v1498
        %v1500 = vsel %vm1482, %v1362, %v1499
        %v1501 = vsel %vm1484, %v1366, %v1500
        %v1502 = vsel %vm1486, %v1370, %v1501
        %v1503 = vsel %vm1488, %v1374, %v1502
        %v1504 = vsel %vm1476, %v1351, %v1347
        %v1505 = vsel %vm1478, %v1355, %v1504
        %v1506 = vsel %vm1480, %v1359, %v1505
        %v1507 = vsel %vm1482, %v1363, %v1506
        %v1508 = vsel %vm1484, %v1367, %v1507
        %v1509 = vsel %vm1486, %v1371, %v1508
        %v1510 = vsel %vm1488, %v1375, %v1509
        %1515 = vmatpush.msra.mxu0 %v1391
        %1516 = vmatpush.msra.mxu0 %v1390
        %1517 = vmatpush.msra.mxu0 %v1389
        %1518 = vmatpush.msra.mxu0 %v1388
        %1519 = vmatpush.msra.mxu0 %v1387
        %1520 = vmatpush.msra.mxu0 %v1386
        %1521 = vmatpush.msra.mxu0 %v1385
        %1522 = vmatpush.msra.mxu0 %v1384
        %1523 = vmatpush.msra.mxu0 %v1383
        %1524 = vmatpush.msra.mxu0 %v1382
        %1525 = vmatpush.msra.mxu0 %v1381
        %1526 = vmatpush.msra.mxu0 %v1380
        %1527 = vmatpush.msra.mxu0 %v1379
        %1528 = vmatpush.msra.mxu0 %v1378
        %1529 = vmatpush.msra.mxu0 %v1377
        %1530 = vmatpush.msra.mxu0 %v1376
        %1531 = vmatmul.f32.gmra.mxu0 %v1489
        %v1532 = vpop.f32.mrf.mxu0
        %v1533 = vadd.f32 %v1442, %v1532
        %1534 = vdwg.mxu0
        %1535 = vmatpush.msra.mxu0 %v1407
        %1536 = vmatpush.msra.mxu0 %v1406
        %1537 = vmatpush.msra.mxu0 %v1405
        %1538 = vmatpush.msra.mxu0 %v1404
        %1539 = vmatpush.msra.mxu0 %v1403
        %1540 = vmatpush.msra.mxu0 %v1402
        %1541 = vmatpush.msra.mxu0 %v1401
        %1542 = vmatpush.msra.mxu0 %v1400
        %1543 = vmatpush.msra.mxu0 %v1399
        %1544 = vmatpush.msra.mxu0 %v1398
        %1545 = vmatpush.msra.mxu0 %v1397
        %1546 = vmatpush.msra.mxu0 %v1396
        %1547 = vmatpush.msra.mxu0 %v1395
        %1548 = vmatpush.msra.mxu0 %v1394
        %1549 = vmatpush.msra.mxu0 %v1393
        %1550 = vmatpush.msra.mxu0 %v1392
        %1551 = vmatmul.f32.gmra.mxu0 %v1496
        %v1552 = vpop.f32.mrf.mxu0
        %v1553 = vadd.f32 %v1533, %v1552
        %1554 = vdwg.mxu0
        %1555 = vmatpush.msra.mxu0 %v1423
        %1556 = vmatpush.msra.mxu0 %v1422
        %1557 = vmatpush.msra.mxu0 %v1421
        %1558 = vmatpush.msra.mxu0 %v1420
        %1559 = vmatpush.msra.mxu0 %v1419
        %1560 = vmatpush.msra.mxu0 %v1418
        %1561 = vmatpush.msra.mxu0 %v1417
        %1562 = vmatpush.msra.mxu0 %v1416
        %1563 = vmatpush.msra.mxu0 %v1415
        %1564 = vmatpush.msra.mxu0 %v1414
        %1565 = vmatpush.msra.mxu0 %v1413
        %1566 = vmatpush.msra.mxu0 %v1412
        %1567 = vmatpush.msra.mxu0 %v1411
        %1568 = vmatpush.msra.mxu0 %v1410
        %1569 = vmatpush.msra.mxu0 %v1409
        %1570 = vmatpush.msra.mxu0 %v1408
        %1571 = vmatmul.f32.gmra.mxu0 %v1503
        %v1572 = vpop.f32.mrf.mxu0
        %v1573 = vadd.f32 %v1553, %v1572
        %1574 = vdwg.mxu0
        %1575 = vmatpush.msra.mxu0 %v1439
        %1576 = vmatpush.msra.mxu0 %v1438
        %1577 = vmatpush.msra.mxu0 %v1437
        %1578 = vmatpush.msra.mxu0 %v1436
        %1579 = vmatpush.msra.mxu0 %v1435
        %1580 = vmatpush.msra.mxu0 %v1434
        %1581 = vmatpush.msra.mxu0 %v1433
        %1582 = vmatpush.msra.mxu0 %v1432
        %1583 = vmatpush.msra.mxu0 %v1431
        %1584 = vmatpush.msra.mxu0 %v1430
        %1585 = vmatpush.msra.mxu0 %v1429
        %1586 = vmatpush.msra.mxu0 %v1428
        %1587 = vmatpush.msra.mxu0 %v1427
        %1588 = vmatpush.msra.mxu0 %v1426
        %1589 = vmatpush.msra.mxu0 %v1425
        %1590 = vmatpush.msra.mxu0 %v1424
        %1591 = vmatmul.f32.gmra.mxu0 %v1510
        %v1592 = vpop.f32.mrf.mxu0
        %v1593 = vadd.f32 %v1573, %v1592
        %1594 = vdwg.mxu0
        %1595 = vst [vmem:[%s222] sm:$0xff] %v1593
        %s1596 = sand.u32 %s97, 1
        %s1597 = scalar_lea.sflag [#allocation4], %s1596
        %s1598 = sand.u32 %s97, 1
        %s1599 = smul.addr %s1598, 8
        %s1600 = scalar_lea.vmem [#allocation8], %s1599
        // Predicated region
        $region45: #{baseline_head.1} parent=31 // pred_check
          %p1601 = pneg %p107
        $region46: #{baseline_head.1} parent=31 // pred_check_branch
          %1603 = sbr.rel (%p1601) target = $region48
        $region47: #{baseline_head.1} parent=31 // pred_region
          %1605 = vsyncadd %s1597, 0
          %s1606 = smul.addr %s21, 8
          %s1607 = scalar_lea.hbm %s3, %s1606
          %s1609 = sshll.u32 %s1600, 4
          %s1610 = int_to_ptr.vmem [resolvable:$true] %s1609
          %s1611 = sshll.u32 %s1607, 4
          %s1612 = int_to_ptr.hbm [resolvable:$true] %s1611
          %1614 = dma.vmem_to_hbm [thread:$0]  %s1610, 128, %s1612, %s1597
        $region48: #{baseline_head.1} parent=31 // pred_fallthru
          _
      $region32: #{baseline_head.1} parent=5 // pred_fallthru
        _
      %p1615 = scmp.le.s32.totalorder 2, %s16
      // Predicated region
      $region49: #{baseline_head.1} parent=5 // pred_check
        %p1616 = pneg %p1615
      $region50: #{baseline_head.1} parent=5 // pred_check_branch
        %1618 = sbr.rel (%p1616) target = $region52
      $region51: #{baseline_head.1} parent=5 // pred_region
        %s1619 = ssub.s32 %s16, 2
        // Predicated region
        $region53: #{baseline_head.1} parent=51 // pred_check
          %p1620 = pneg %p113
        $region54: #{baseline_head.1} parent=51 // pred_check_branch
          %1622 = sbr.rel (%p1620) target = $region56
        $region55: #{baseline_head.1} parent=51 // pred_region
          %s1623 = sand.u32 %s98, 1
          %s1624 = scalar_lea.sflag [#allocation4], %s1623
          %s1625 = sand.u32 %s98, 1
          %s1626 = smul.addr %s1625, 8
          %s1627 = scalar_lea.vmem [#allocation8], %s1626
          %1629 = dma.done %s1624, 128
        $region56: #{baseline_head.1} parent=51 // pred_fallthru
          _
      $region52: #{baseline_head.1} parent=5 // pred_fallthru
        _
    $region6: #{baseline_head.1} parent=1 // loop_footer
      %s20 = sadd.s32 1, %s16
    $region7: #{baseline_head.1} parent=1 // loop_footer_branch
      %15 = sbr.rel target = $region3
    $region8: #{baseline_head.1} parent=1 // loop_exit
      _
    %1630 = vsyncpa [#allocation3], 1
    %s1631 = scalar_lea.sflag [#allocation3], 1
    %1632 = vsyncpa %s1631, 1
    %1633 = vsyncpa [#allocation6], 1
    %1634 = vsyncpa [#allocation4], 1
    %s1635 = scalar_lea.sflag [#allocation4], 1
    %1636 = vsyncpa %s1635, 1

</llo_original>
